<compile_context>
chip_gen: v5e
topology: v5e:2x2
jax: 0.10.0
libtpu: 0.0.40
codegen_flags: <defaults>
</compile_context>

<pallas_src>
import functools
import math

import jax
import jax.numpy as jnp
from jax import lax
from jax.experimental import pallas as pl
from jax.experimental.pallas import tpu as pltpu


def _round_up(x, m):
    return ((x + m - 1) // m) * m


def _encoder_gru_kernel(ids_smem, ids_vmem, emb_hbm, wih_ref, whh_hbm, bih_ref,
                        bhh_ref, h0_ref, out_ref, hn_ref, *scratch,
                        hidden_pad, seq_len, vocab_size, small_vocab):
    """Processes the whole (batch=1) sequence in one invocation.

    ids_smem : SMEM int32 (S,)        token ids (scalar addressing, large-vocab path)
    ids_vmem : VMEM int32 (S, 1)      token ids (one-hot gather, small-vocab path)
    emb_hbm  : HBM  f32   (Vp, Hp)    embedding table (never auto-copied)
    wih_ref  : VMEM f32   (Hp, 3Hp)   fused input->hidden weights, gates [r|z|n] on lanes
    whh_hbm  : HBM  f32   (Hp, 3Hp)   fused hidden->hidden weights (manual async DMA)
    bih_ref  : VMEM f32   (1, 3Hp)
    bhh_ref  : VMEM f32   (1, 3Hp)
    h0_ref   : VMEM f32   (1, Hp)     initial hidden state (zero-padded lanes)
    out_ref  : VMEM f32   (S, Hp)     per-timestep hidden states (GRU output)
    hn_ref   : VMEM f32   (1, Hp)     final hidden state
    """
    S, Hp = seq_len, hidden_pad
    if small_vocab:
        emb_vmem, x_ref, gi_ref, whh_vmem, emb_sem, whh_sem = scratch
    else:
        x_ref, gi_ref, whh_vmem, emb_sem, whh_sem = scratch

    # --- 0. Kick off the W_hh HBM->VMEM copy immediately; it overlaps with the
    #        embedding copy/gather and the hoisted GI matmul below.
    whh_cp = pltpu.make_async_copy(whh_hbm, whh_vmem, whh_sem)
    whh_cp.start()

    # --- 1. Gather embeddings.
    if small_vocab:
        # One bulk DMA of the whole (padded) table, then a one-hot MXU gather.
        emb_cp = pltpu.make_async_copy(emb_hbm, emb_vmem, emb_sem)
        emb_cp.start()
        emb_cp.wait()
        ids = jnp.clip(ids_vmem[...], 0, vocab_size - 1)                # (S, 1)
        vp = emb_vmem.shape[0]
        onehot = (ids == lax.broadcasted_iota(jnp.int32, (S, vp), 1)
                  ).astype(jnp.float32)                                 # (S, Vp)
        x_ref[...] = jnp.dot(onehot, emb_vmem[...],
                             preferred_element_type=jnp.float32)        # (S, Hp)
    else:
        # Per-row DMA gather from HBM; all copies share one DMA semaphore.
        copies = []
        for t in range(S):   # static unroll; S is a compile-time constant
            idx = jnp.clip(ids_smem[t], 0, vocab_size - 1)
            cp = pltpu.make_async_copy(emb_hbm.at[pl.ds(idx, 1), :],
                                       x_ref.at[pl.ds(t, 1), :],
                                       emb_sem)
            cp.start()
            copies.append(cp)
        for cp in copies:
            cp.wait()

    # --- 2. Hoisted input-to-hidden pre-activations: ONE (S,Hp)@(Hp,3Hp) matmul.
    gi_ref[...] = jnp.dot(x_ref[...], wih_ref[...],
                          preferred_element_type=jnp.float32) + bih_ref[...]

    # --- 3. Serial recurrence: one fused (1,Hp)@(Hp,3Hp) matmul per step.
    whh_cp.wait()   # W_hh is now in VMEM (copy overlapped with steps 1-2).

    def step(t, h):
        gh = jnp.dot(h, whh_vmem[...],
                     preferred_element_type=jnp.float32) + bhh_ref[...]   # (1, 3Hp)
        gi = gi_ref[pl.ds(t, 1), :]                                       # (1, 3Hp)
        r = jax.nn.sigmoid(gi[:, 0:Hp] + gh[:, 0:Hp])
        z = jax.nn.sigmoid(gi[:, Hp:2 * Hp] + gh[:, Hp:2 * Hp])
        n = jnp.tanh(gi[:, 2 * Hp:3 * Hp] + r * gh[:, 2 * Hp:3 * Hp])
        h_new = (1.0 - z) * n + z * h
        out_ref[pl.ds(t, 1), :] = h_new                                   # lane-dense store
        return h_new

    unroll = True if S <= 16 else 8   # bound the unroll for long sequences
    h_final = lax.fori_loop(0, S, step, h0_ref[...], unroll=unroll)
    hn_ref[...] = h_final


def prepare_params(params):
    """Convert torch-layout params (embedding (V,H), w_* (3H,H), b_* (3H,)) into the
    kernel's fused, lane-padded layout."""
    emb = params["embedding"]
    V, H = emb.shape
    Hp = _round_up(H, 128)
    Vp = _round_up(V, 8)

    def fuse_w(w):           # torch (3H, H) -> fused (Hp, 3Hp), each gate transposed
        wf = jnp.zeros((Hp, 3 * Hp), jnp.float32)
        for g in range(3):
            wf = wf.at[:H, g * Hp:g * Hp + H].set(w[g * H:(g + 1) * H, :].T)
        return wf

    def fuse_b(b):           # torch (3H,) -> fused (1, 3Hp)
        bf = jnp.zeros((1, 3 * Hp), jnp.float32)
        for g in range(3):
            bf = bf.at[0, g * Hp:g * Hp + H].set(b[g * H:(g + 1) * H])
        return bf

    emb_p = jnp.zeros((Vp, Hp), jnp.float32).at[:V, :H].set(emb)
    return {
        "embedding": emb_p,
        "w_ih": fuse_w(params["w_ih"]), "w_hh": fuse_w(params["w_hh"]),
        "b_ih": fuse_b(params["b_ih"]), "b_hh": fuse_b(params["b_hh"]),
        "H": H, "Hp": Hp, "V": V, "Vp": Vp,
    }


def encoder_rnn_forward(word_inputs, hidden, kparams):
    """Mirrors EncoderRNN.forward: returns (output (S,1,H), hidden (1,1,H))."""
    S = word_inputs.shape[1]
    H, Hp, V, Vp = kparams["H"], kparams["Hp"], kparams["V"], kparams["Vp"]

    ids = word_inputs[0].astype(jnp.int32)               # (S,)
    ids_col = ids.reshape(S, 1)                          # (S, 1) for the one-hot path
    h0p = jnp.zeros((1, Hp), jnp.float32).at[:, :H].set(hidden[0])

    # Small-vocab fast path: bulk-copy the whole table to VMEM (<= 4 MiB padded).
    small_vocab = (Vp * Hp * 4) <= (4 << 20)

    kernel = functools.partial(_encoder_gru_kernel, hidden_pad=Hp, seq_len=S,
                               vocab_size=V, small_vocab=small_vocab)

    scratch_shapes = []
    if small_vocab:
        scratch_shapes.append(pltpu.VMEM((Vp, Hp), jnp.float32))   # embedding table
    scratch_shapes += [
        pltpu.VMEM((S, Hp), jnp.float32),        # gathered embeddings X
        pltpu.VMEM((S, 3 * Hp), jnp.float32),    # fused GI = X @ W_ih + b_ih
        pltpu.VMEM((Hp, 3 * Hp), jnp.float32),   # staged W_hh
        pltpu.SemaphoreType.DMA(()),             # embedding DMA sem
        pltpu.SemaphoreType.DMA(()),             # W_hh DMA sem
    ]

    # Explicit VMEM budget (important on v7x's 64 MiB / v5e's 16 MiB scoped default).
    est = 4 * (Hp * 3 * Hp            # w_ih input
               + 2 * 3 * Hp + Hp      # biases + h0
               + S * Hp + Hp          # out + hn
               + S                    # ids (vmem)
               + S * Hp               # X scratch
               + S * 3 * Hp           # GI scratch
               + Hp * 3 * Hp          # W_hh scratch
               + (Vp * Hp if small_vocab else 0))
    vmem_limit = max(16 << 20, min(2 * est + (1 << 20), 64 << 20))

    out, hn = pl.pallas_call(
        kernel,
        out_shape=(jax.ShapeDtypeStruct((S, Hp), jnp.float32),
                   jax.ShapeDtypeStruct((1, Hp), jnp.float32)),
        in_specs=[
            pl.BlockSpec(memory_space=pltpu.MemorySpace.SMEM),   # ids (scalar path)
            pl.BlockSpec(memory_space=pltpu.MemorySpace.VMEM),   # ids (one-hot path)
            pl.BlockSpec(memory_space=pl.ANY),                   # embedding stays in HBM
            pl.BlockSpec(memory_space=pltpu.MemorySpace.VMEM),   # W_ih fused (Hp,3Hp)
            pl.BlockSpec(memory_space=pl.ANY),                   # W_hh fused -> manual DMA
            pl.BlockSpec(memory_space=pltpu.MemorySpace.VMEM),   # b_ih (1,3Hp)
            pl.BlockSpec(memory_space=pltpu.MemorySpace.VMEM),   # b_hh (1,3Hp)
            pl.BlockSpec(memory_space=pltpu.MemorySpace.VMEM),   # h0   (1,Hp)
        ],
        out_specs=(pl.BlockSpec(memory_space=pltpu.MemorySpace.VMEM),
                   pl.BlockSpec(memory_space=pltpu.MemorySpace.VMEM)),
        scratch_shapes=scratch_shapes,
        compiler_params=pltpu.CompilerParams(vmem_limit_bytes=vmem_limit),
    )(ids, ids_col, kparams["embedding"], kparams["w_ih"], kparams["w_hh"],
      kparams["b_ih"], kparams["b_hh"], h0p)

    output = out[:, :H].reshape(S, 1, H)       # like torch GRU output (S, 1, H)
    hidden_out = hn[:, :H].reshape(1, 1, H)    # (n_layers, 1, H)
    return output, hidden_out


def _reference_forward(word_inputs, hidden, params):
    """Pure-JAX reference in the original torch layout (independent of kernel layout)."""
    emb = params["embedding"]
    H = emb.shape[1]
    ids = word_inputs[0]
    xs = emb[ids]                             # (S, H)
    h = hidden[0]                             # (1, H)
    w_ih, w_hh = params["w_ih"], params["w_hh"]        # (3H, H)
    b_ih, b_hh = params["b_ih"], params["b_hh"]        # (3H,)
    outs = []
    for t in range(xs.shape[0]):
        x = xs[t][None, :]
        gi = x @ w_ih.T + b_ih
        gh = h @ w_hh.T + b_hh
        r = jax.nn.sigmoid(gi[:, 0:H] + gh[:, 0:H])
        z = jax.nn.sigmoid(gi[:, H:2 * H] + gh[:, H:2 * H])
        n = jnp.tanh(gi[:, 2 * H:] + r * gh[:, 2 * H:])
        h = (1.0 - z) * n + z * h
        outs.append(h)
    return jnp.stack(outs, 0).reshape(-1, 1, H), h.reshape(1, 1, H)


def init_params(key, input_size, hidden_size):
    """Deterministic params matching nn.Embedding + nn.GRU shapes (torch layout)."""
    H = hidden_size
    k_emb, k_wi, k_wh, k_bi, k_bh = jax.random.split(key, 5)
    bound = 1.0 / math.sqrt(H)
    embedding = jax.random.normal(k_emb, (input_size, H), jnp.float32)
    w_ih = jax.random.uniform(k_wi, (3 * H, H), jnp.float32, -bound, bound)
    w_hh = jax.random.uniform(k_wh, (3 * H, H), jnp.float32, -bound, bound)
    b_ih = jax.random.uniform(k_bi, (3 * H,), jnp.float32, -bound, bound)
    b_hh = jax.random.uniform(k_bh, (3 * H,), jnp.float32, -bound, bound)
    return {"embedding": embedding, "w_ih": w_ih, "w_hh": w_hh,
            "b_ih": b_ih, "b_hh": b_hh}


if __name__ == "__main__":
    INPUT_SIZE = 16    # vocab size
    HIDDEN = 32
    SEQ_LEN = 8
    N_LAYERS = 1

    key = jax.random.PRNGKey(0)
    k_params, k_ids = jax.random.split(key)

    params = init_params(k_params, INPUT_SIZE, HIDDEN)
    kparams = prepare_params(params)

    # word_inputs: (1, S) int32 — module indexes word_inputs[0] for seq_len.
    word_inputs = jax.random.randint(k_ids, (1, SEQ_LEN), 0, INPUT_SIZE,
                                     dtype=jnp.int32)
    # init_hidden(): zeros of shape (n_layers, 1, hidden_size)
    hidden0 = jnp.zeros((N_LAYERS, 1, HIDDEN), jnp.float32)

    output, hidden_out = encoder_rnn_forward(word_inputs, hidden0, kparams)
    jax.block_until_ready((output, hidden_out))

    ref_out, ref_hid = _reference_forward(word_inputs, hidden0, params)
    assert output.shape == (SEQ_LEN, 1, HIDDEN)
    assert hidden_out.shape == (N_LAYERS, 1, HIDDEN)
    assert jnp.allclose(output, ref_out, atol=1e-4, rtol=1e-4)
    assert jnp.allclose(hidden_out, ref_hid, atol=1e-4, rtol=1e-4)

    print("KERNEL_OK")
</pallas_src>

<mosaic_0001>
module attributes {stable_mosaic.version = 11 : i64} {
  func.func @_encoder_gru_kernel(%arg0: memref<8xi32, #tpu.memory_space<smem>>, %arg1: memref<8x1xi32, #tpu.memory_space<vmem>>, %arg2: memref<16x128xf32, #tpu.memory_space<any>>, %arg3: memref<128x384xf32, #tpu.memory_space<vmem>>, %arg4: memref<128x384xf32, #tpu.memory_space<any>>, %arg5: memref<1x384xf32, #tpu.memory_space<vmem>>, %arg6: memref<1x384xf32, #tpu.memory_space<vmem>>, %arg7: memref<1x128xf32, #tpu.memory_space<vmem>>, %arg8: memref<8x128xf32, #tpu.memory_space<vmem>>, %arg9: memref<1x128xf32, #tpu.memory_space<vmem>>, %arg10: memref<16x128xf32, #tpu.memory_space<vmem>>, %arg11: memref<8x128xf32, #tpu.memory_space<vmem>>, %arg12: memref<8x384xf32, #tpu.memory_space<vmem>>, %arg13: memref<128x384xf32, #tpu.memory_space<vmem>>, %arg14: memref<!tpu.dma_semaphore, #tpu.memory_space<semaphore_mem>>, %arg15: memref<!tpu.dma_semaphore, #tpu.memory_space<semaphore_mem>>) attributes {dimension_semantics = [], scalar_prefetch = 0 : i64, scratch_operands = 6 : i64, tpu.core_type = #tpu.core_type<tc>} {
    tpu.enqueue_dma source(%arg4 : memref<128x384xf32, #tpu.memory_space<any>>) target(%arg13 : memref<128x384xf32, #tpu.memory_space<vmem>>) target_semaphore(%arg15 : memref<!tpu.dma_semaphore, #tpu.memory_space<semaphore_mem>>)
    tpu.enqueue_dma source(%arg2 : memref<16x128xf32, #tpu.memory_space<any>>) target(%arg10 : memref<16x128xf32, #tpu.memory_space<vmem>>) target_semaphore(%arg14 : memref<!tpu.dma_semaphore, #tpu.memory_space<semaphore_mem>>)
    tpu.wait_dma2 semaphore(%arg14 : memref<!tpu.dma_semaphore, #tpu.memory_space<semaphore_mem>>) src(%arg2 : memref<16x128xf32, #tpu.memory_space<any>>) dst(%arg10 : memref<16x128xf32, #tpu.memory_space<vmem>>)
    %c0 = arith.constant 0 : index
    %c0_0 = arith.constant 0 : index
    %0 = vector.load %arg1[%c0, %c0_0] : memref<8x1xi32, #tpu.memory_space<vmem>>, vector<8x1xi32>
    %c0_i32 = arith.constant 0 : i32
    %c15_i32 = arith.constant 15 : i32
    %1 = vector.broadcast %c0_i32 : i32 to vector<8x1xi32>
    %2 = arith.maxsi %1, %0 : vector<8x1xi32>
    %3 = vector.broadcast %c15_i32 : i32 to vector<8x1xi32>
    %4 = arith.minsi %3, %2 : vector<8x1xi32>
    %5 = tpu.iota {dimensions = array<i32: 1>} : vector<8x16xi32>
    %6 = vector.broadcast %4 : vector<8x1xi32> to vector<8x16xi32>
    %7 = arith.cmpi eq, %6, %5 : vector<8x16xi32>
    %8 = arith.extui %7 : vector<8x16xi1> to vector<8x16xi32>
    %9 = arith.sitofp %8 : vector<8x16xi32> to vector<8x16xf32>
    %c0_1 = arith.constant 0 : index
    %c0_2 = arith.constant 0 : index
    %10 = vector.load %arg10[%c0_1, %c0_2] : memref<16x128xf32, #tpu.memory_space<vmem>>, vector<16x128xf32>
    %cst = arith.constant dense<0.000000e+00> : vector<8x128xf32>
    %11 = tpu.matmul %9, %10, %cst {dimension_numbers = #tpu.dot_dimension_numbers<[1], [0], [0], [1], [0, 0, 1, 1], [], []>} : vector<8x16xf32>, vector<16x128xf32>, vector<8x128xf32> -> vector<8x128xf32>
    %c0_3 = arith.constant 0 : index
    %c0_4 = arith.constant 0 : index
    %12 = vector.load %arg11[%c0_3, %c0_4] : memref<8x128xf32, #tpu.memory_space<vmem>>, vector<8x128xf32>
    tpu.vector_store %arg11[%c0_3, %c0_4], %11 {strides = array<i32>} : memref<8x128xf32, #tpu.memory_space<vmem>>, vector<8x128xf32>,
    %c0_5 = arith.constant 0 : index
    %c0_6 = arith.constant 0 : index
    %13 = vector.load %arg11[%c0_5, %c0_6] : memref<8x128xf32, #tpu.memory_space<vmem>>, vector<8x128xf32>
    %c0_7 = arith.constant 0 : index
    %c0_8 = arith.constant 0 : index
    %14 = vector.load %arg3[%c0_7, %c0_8] : memref<128x384xf32, #tpu.memory_space<vmem>>, vector<128x384xf32>
    %cst_9 = arith.constant dense<0.000000e+00> : vector<8x384xf32>
    %15 = tpu.matmul %13, %14, %cst_9 {dimension_numbers = #tpu.dot_dimension_numbers<[1], [0], [0], [1], [0, 0, 1, 1], [], []>} : vector<8x128xf32>, vector<128x384xf32>, vector<8x384xf32> -> vector<8x384xf32>
    %c0_10 = arith.constant 0 : index
    %c0_11 = arith.constant 0 : index
    %16 = vector.load %arg5[%c0_10, %c0_11] : memref<1x384xf32, #tpu.memory_space<vmem>>, vector<1x384xf32>
    %17 = vector.broadcast %16 : vector<1x384xf32> to vector<8x384xf32>
    %18 = arith.addf %15, %17 : vector<8x384xf32>
    %c0_12 = arith.constant 0 : index
    %c0_13 = arith.constant 0 : index
    %19 = vector.load %arg12[%c0_12, %c0_13] : memref<8x384xf32, #tpu.memory_space<vmem>>, vector<8x384xf32>
    tpu.vector_store %arg12[%c0_12, %c0_13], %18 {strides = array<i32>} : memref<8x384xf32, #tpu.memory_space<vmem>>, vector<8x384xf32>,
    tpu.wait_dma2 semaphore(%arg15 : memref<!tpu.dma_semaphore, #tpu.memory_space<semaphore_mem>>) src(%arg4 : memref<128x384xf32, #tpu.memory_space<any>>) dst(%arg13 : memref<128x384xf32, #tpu.memory_space<vmem>>)
    %c0_14 = arith.constant 0 : index
    %c0_15 = arith.constant 0 : index
    %20 = vector.load %arg7[%c0_14, %c0_15] : memref<1x128xf32, #tpu.memory_space<vmem>>, vector<1x128xf32>
    %c0_i32_16 = arith.constant 0 : i32
    %c0_17 = arith.constant 0 : index
    %c0_18 = arith.constant 0 : index
    %21 = vector.load %arg13[%c0_17, %c0_18] : memref<128x384xf32, #tpu.memory_space<vmem>>, vector<128x384xf32>
    %cst_19 = arith.constant dense<0.000000e+00> : vector<1x384xf32>
    %22 = tpu.matmul %20, %21, %cst_19 {dimension_numbers = #tpu.dot_dimension_numbers<[1], [0], [0], [1], [0, 0, 1, 1], [], []>} : vector<1x128xf32>, vector<128x384xf32>, vector<1x384xf32> -> vector<1x384xf32>
    %c0_20 = arith.constant 0 : index
    %c0_21 = arith.constant 0 : index
    %23 = vector.load %arg6[%c0_20, %c0_21] : memref<1x384xf32, #tpu.memory_space<vmem>>, vector<1x384xf32>
    %24 = arith.addf %22, %23 : vector<1x384xf32>
    %25 = arith.index_cast %c0_i32_16 : i32 to index
    %c0_22 = arith.constant 0 : index
    %26 = vector.load %arg12[%25, %c0_22] : memref<8x384xf32, #tpu.memory_space<vmem>>, vector<1x384xf32>
    %27 = vector.extract_strided_slice %26 {offsets = [0, 0], sizes = [1, 128], strides = [1, 1]} : vector<1x384xf32> to vector<1x128xf32>
    %28 = vector.extract_strided_slice %24 {offsets = [0, 0], sizes = [1, 128], strides = [1, 1]} : vector<1x384xf32> to vector<1x128xf32>
    %29 = arith.addf %27, %28 : vector<1x128xf32>
    %30 = arith.negf %29 : vector<1x128xf32>
    %31 = math.exp %30 : vector<1x128xf32>
    %cst_23 = arith.constant 1.000000e+00 : f32
    %32 = vector.broadcast %cst_23 : f32 to vector<1x128xf32>
    %33 = arith.addf %32, %31 : vector<1x128xf32>
    %34 = arith.divf %32, %33 : vector<1x128xf32>
    %35 = vector.extract_strided_slice %26 {offsets = [0, 128], sizes = [1, 128], strides = [1, 1]} : vector<1x384xf32> to vector<1x128xf32>
    %36 = vector.extract_strided_slice %24 {offsets = [0, 128], sizes = [1, 128], strides = [1, 1]} : vector<1x384xf32> to vector<1x128xf32>
    %37 = arith.addf %35, %36 : vector<1x128xf32>
    %38 = arith.negf %37 : vector<1x128xf32>
    %39 = math.exp %38 : vector<1x128xf32>
    %cst_24 = arith.constant 1.000000e+00 : f32
    %40 = vector.broadcast %cst_24 : f32 to vector<1x128xf32>
    %41 = arith.addf %40, %39 : vector<1x128xf32>
    %42 = arith.divf %40, %41 : vector<1x128xf32>
    %43 = vector.extract_strided_slice %26 {offsets = [0, 256], sizes = [1, 128], strides = [1, 1]} : vector<1x384xf32> to vector<1x128xf32>
    %44 = vector.extract_strided_slice %24 {offsets = [0, 256], sizes = [1, 128], strides = [1, 1]} : vector<1x384xf32> to vector<1x128xf32>
    %45 = arith.mulf %34, %44 : vector<1x128xf32>
    %46 = arith.addf %43, %45 : vector<1x128xf32>
    %47 = math.tanh %46 : vector<1x128xf32>
    %cst_25 = arith.constant 1.000000e+00 : f32
    %48 = vector.broadcast %cst_25 : f32 to vector<1x128xf32>
    %49 = arith.subf %48, %42 : vector<1x128xf32>
    %50 = arith.mulf %49, %47 : vector<1x128xf32>
    %51 = arith.mulf %42, %20 : vector<1x128xf32>
    %52 = arith.addf %50, %51 : vector<1x128xf32>
    %53 = arith.index_cast %c0_i32_16 : i32 to index
    %c0_26 = arith.constant 0 : index
    %54 = vector.load %arg8[%53, %c0_26] : memref<8x128xf32, #tpu.memory_space<vmem>>, vector<1x128xf32>
    tpu.vector_store %arg8[%53, %c0_26], %52 {strides = array<i32>} : memref<8x128xf32, #tpu.memory_space<vmem>>, vector<1x128xf32>,
    %c1_i32 = arith.constant 1 : i32
    %c0_27 = arith.constant 0 : index
    %c0_28 = arith.constant 0 : index
    %55 = vector.load %arg13[%c0_27, %c0_28] : memref<128x384xf32, #tpu.memory_space<vmem>>, vector<128x384xf32>
    %cst_29 = arith.constant dense<0.000000e+00> : vector<1x384xf32>
    %56 = tpu.matmul %52, %55, %cst_29 {dimension_numbers = #tpu.dot_dimension_numbers<[1], [0], [0], [1], [0, 0, 1, 1], [], []>} : vector<1x128xf32>, vector<128x384xf32>, vector<1x384xf32> -> vector<1x384xf32>
    %c0_30 = arith.constant 0 : index
    %c0_31 = arith.constant 0 : index
    %57 = vector.load %arg6[%c0_30, %c0_31] : memref<1x384xf32, #tpu.memory_space<vmem>>, vector<1x384xf32>
    %58 = arith.addf %56, %57 : vector<1x384xf32>
    %59 = arith.index_cast %c1_i32 : i32 to index
    %c0_32 = arith.constant 0 : index
    %60 = vector.load %arg12[%59, %c0_32] : memref<8x384xf32, #tpu.memory_space<vmem>>, vector<1x384xf32>
    %61 = vector.extract_strided_slice %60 {offsets = [0, 0], sizes = [1, 128], strides = [1, 1]} : vector<1x384xf32> to vector<1x128xf32>
    %62 = vector.extract_strided_slice %58 {offsets = [0, 0], sizes = [1, 128], strides = [1, 1]} : vector<1x384xf32> to vector<1x128xf32>
    %63 = arith.addf %61, %62 : vector<1x128xf32>
    %64 = arith.negf %63 : vector<1x128xf32>
    %65 = math.exp %64 : vector<1x128xf32>
    %cst_33 = arith.constant 1.000000e+00 : f32
    %66 = vector.broadcast %cst_33 : f32 to vector<1x128xf32>
    %67 = arith.addf %66, %65 : vector<1x128xf32>
    %68 = arith.divf %66, %67 : vector<1x128xf32>
    %69 = vector.extract_strided_slice %60 {offsets = [0, 128], sizes = [1, 128], strides = [1, 1]} : vector<1x384xf32> to vector<1x128xf32>
    %70 = vector.extract_strided_slice %58 {offsets = [0, 128], sizes = [1, 128], strides = [1, 1]} : vector<1x384xf32> to vector<1x128xf32>
    %71 = arith.addf %69, %70 : vector<1x128xf32>
    %72 = arith.negf %71 : vector<1x128xf32>
    %73 = math.exp %72 : vector<1x128xf32>
    %cst_34 = arith.constant 1.000000e+00 : f32
    %74 = vector.broadcast %cst_34 : f32 to vector<1x128xf32>
    %75 = arith.addf %74, %73 : vector<1x128xf32>
    %76 = arith.divf %74, %75 : vector<1x128xf32>
    %77 = vector.extract_strided_slice %60 {offsets = [0, 256], sizes = [1, 128], strides = [1, 1]} : vector<1x384xf32> to vector<1x128xf32>
    %78 = vector.extract_strided_slice %58 {offsets = [0, 256], sizes = [1, 128], strides = [1, 1]} : vector<1x384xf32> to vector<1x128xf32>
    %79 = arith.mulf %68, %78 : vector<1x128xf32>
    %80 = arith.addf %77, %79 : vector<1x128xf32>
    %81 = math.tanh %80 : vector<1x128xf32>
    %cst_35 = arith.constant 1.000000e+00 : f32
    %82 = vector.broadcast %cst_35 : f32 to vector<1x128xf32>
    %83 = arith.subf %82, %76 : vector<1x128xf32>
    %84 = arith.mulf %83, %81 : vector<1x128xf32>
    %85 = arith.mulf %76, %52 : vector<1x128xf32>
    %86 = arith.addf %84, %85 : vector<1x128xf32>
    %87 = arith.index_cast %c1_i32 : i32 to index
    %c0_36 = arith.constant 0 : index
    %88 = vector.load %arg8[%87, %c0_36] : memref<8x128xf32, #tpu.memory_space<vmem>>, vector<1x128xf32>
    tpu.vector_store %arg8[%87, %c0_36], %86 {strides = array<i32>} : memref<8x128xf32, #tpu.memory_space<vmem>>, vector<1x128xf32>,
    %c2_i32 = arith.constant 2 : i32
    %c0_37 = arith.constant 0 : index
    %c0_38 = arith.constant 0 : index
    %89 = vector.load %arg13[%c0_37, %c0_38] : memref<128x384xf32, #tpu.memory_space<vmem>>, vector<128x384xf32>
    %cst_39 = arith.constant dense<0.000000e+00> : vector<1x384xf32>
    %90 = tpu.matmul %86, %89, %cst_39 {dimension_numbers = #tpu.dot_dimension_numbers<[1], [0], [0], [1], [0, 0, 1, 1], [], []>} : vector<1x128xf32>, vector<128x384xf32>, vector<1x384xf32> -> vector<1x384xf32>
    %c0_40 = arith.constant 0 : index
    %c0_41 = arith.constant 0 : index
    %91 = vector.load %arg6[%c0_40, %c0_41] : memref<1x384xf32, #tpu.memory_space<vmem>>, vector<1x384xf32>
    %92 = arith.addf %90, %91 : vector<1x384xf32>
    %93 = arith.index_cast %c2_i32 : i32 to index
    %c0_42 = arith.constant 0 : index
    %94 = vector.load %arg12[%93, %c0_42] : memref<8x384xf32, #tpu.memory_space<vmem>>, vector<1x384xf32>
    %95 = vector.extract_strided_slice %94 {offsets = [0, 0], sizes = [1, 128], strides = [1, 1]} : vector<1x384xf32> to vector<1x128xf32>
    %96 = vector.extract_strided_slice %92 {offsets = [0, 0], sizes = [1, 128], strides = [1, 1]} : vector<1x384xf32> to vector<1x128xf32>
    %97 = arith.addf %95, %96 : vector<1x128xf32>
    %98 = arith.negf %97 : vector<1x128xf32>
    %99 = math.exp %98 : vector<1x128xf32>
    %cst_43 = arith.constant 1.000000e+00 : f32
    %100 = vector.broadcast %cst_43 : f32 to vector<1x128xf32>
    %101 = arith.addf %100, %99 : vector<1x128xf32>
    %102 = arith.divf %100, %101 : vector<1x128xf32>
    %103 = vector.extract_strided_slice %94 {offsets = [0, 128], sizes = [1, 128], strides = [1, 1]} : vector<1x384xf32> to vector<1x128xf32>
    %104 = vector.extract_strided_slice %92 {offsets = [0, 128], sizes = [1, 128], strides = [1, 1]} : vector<1x384xf32> to vector<1x128xf32>
    %105 = arith.addf %103, %104 : vector<1x128xf32>
    %106 = arith.negf %105 : vector<1x128xf32>
    %107 = math.exp %106 : vector<1x128xf32>
    %cst_44 = arith.constant 1.000000e+00 : f32
    %108 = vector.broadcast %cst_44 : f32 to vector<1x128xf32>
    %109 = arith.addf %108, %107 : vector<1x128xf32>
    %110 = arith.divf %108, %109 : vector<1x128xf32>
    %111 = vector.extract_strided_slice %94 {offsets = [0, 256], sizes = [1, 128], strides = [1, 1]} : vector<1x384xf32> to vector<1x128xf32>
    %112 = vector.extract_strided_slice %92 {offsets = [0, 256], sizes = [1, 128], strides = [1, 1]} : vector<1x384xf32> to vector<1x128xf32>
    %113 = arith.mulf %102, %112 : vector<1x128xf32>
    %114 = arith.addf %111, %113 : vector<1x128xf32>
    %115 = math.tanh %114 : vector<1x128xf32>
    %cst_45 = arith.constant 1.000000e+00 : f32
    %116 = vector.broadcast %cst_45 : f32 to vector<1x128xf32>
    %117 = arith.subf %116, %110 : vector<1x128xf32>
    %118 = arith.mulf %117, %115 : vector<1x128xf32>
    %119 = arith.mulf %110, %86 : vector<1x128xf32>
    %120 = arith.addf %118, %119 : vector<1x128xf32>
    %121 = arith.index_cast %c2_i32 : i32 to index
    %c0_46 = arith.constant 0 : index
    %122 = vector.load %arg8[%121, %c0_46] : memref<8x128xf32, #tpu.memory_space<vmem>>, vector<1x128xf32>
    tpu.vector_store %arg8[%121, %c0_46], %120 {strides = array<i32>} : memref<8x128xf32, #tpu.memory_space<vmem>>, vector<1x128xf32>,
    %c3_i32 = arith.constant 3 : i32
    %c0_47 = arith.constant 0 : index
    %c0_48 = arith.constant 0 : index
    %123 = vector.load %arg13[%c0_47, %c0_48] : memref<128x384xf32, #tpu.memory_space<vmem>>, vector<128x384xf32>
    %cst_49 = arith.constant dense<0.000000e+00> : vector<1x384xf32>
    %124 = tpu.matmul %120, %123, %cst_49 {dimension_numbers = #tpu.dot_dimension_numbers<[1], [0], [0], [1], [0, 0, 1, 1], [], []>} : vector<1x128xf32>, vector<128x384xf32>, vector<1x384xf32> -> vector<1x384xf32>
    %c0_50 = arith.constant 0 : index
    %c0_51 = arith.constant 0 : index
    %125 = vector.load %arg6[%c0_50, %c0_51] : memref<1x384xf32, #tpu.memory_space<vmem>>, vector<1x384xf32>
    %126 = arith.addf %124, %125 : vector<1x384xf32>
    %127 = arith.index_cast %c3_i32 : i32 to index
    %c0_52 = arith.constant 0 : index
    %128 = vector.load %arg12[%127, %c0_52] : memref<8x384xf32, #tpu.memory_space<vmem>>, vector<1x384xf32>
    %129 = vector.extract_strided_slice %128 {offsets = [0, 0], sizes = [1, 128], strides = [1, 1]} : vector<1x384xf32> to vector<1x128xf32>
    %130 = vector.extract_strided_slice %126 {offsets = [0, 0], sizes = [1, 128], strides = [1, 1]} : vector<1x384xf32> to vector<1x128xf32>
    %131 = arith.addf %129, %130 : vector<1x128xf32>
    %132 = arith.negf %131 : vector<1x128xf32>
    %133 = math.exp %132 : vector<1x128xf32>
    %cst_53 = arith.constant 1.000000e+00 : f32
    %134 = vector.broadcast %cst_53 : f32 to vector<1x128xf32>
    %135 = arith.addf %134, %133 : vector<1x128xf32>
    %136 = arith.divf %134, %135 : vector<1x128xf32>
    %137 = vector.extract_strided_slice %128 {offsets = [0, 128], sizes = [1, 128], strides = [1, 1]} : vector<1x384xf32> to vector<1x128xf32>
    %138 = vector.extract_strided_slice %126 {offsets = [0, 128], sizes = [1, 128], strides = [1, 1]} : vector<1x384xf32> to vector<1x128xf32>
    %139 = arith.addf %137, %138 : vector<1x128xf32>
    %140 = arith.negf %139 : vector<1x128xf32>
    %141 = math.exp %140 : vector<1x128xf32>
    %cst_54 = arith.constant 1.000000e+00 : f32
    %142 = vector.broadcast %cst_54 : f32 to vector<1x128xf32>
    %143 = arith.addf %142, %141 : vector<1x128xf32>
    %144 = arith.divf %142, %143 : vector<1x128xf32>
    %145 = vector.extract_strided_slice %128 {offsets = [0, 256], sizes = [1, 128], strides = [1, 1]} : vector<1x384xf32> to vector<1x128xf32>
    %146 = vector.extract_strided_slice %126 {offsets = [0, 256], sizes = [1, 128], strides = [1, 1]} : vector<1x384xf32> to vector<1x128xf32>
    %147 = arith.mulf %136, %146 : vector<1x128xf32>
    %148 = arith.addf %145, %147 : vector<1x128xf32>
    %149 = math.tanh %148 : vector<1x128xf32>
    %cst_55 = arith.constant 1.000000e+00 : f32
    %150 = vector.broadcast %cst_55 : f32 to vector<1x128xf32>
    %151 = arith.subf %150, %144 : vector<1x128xf32>
    %152 = arith.mulf %151, %149 : vector<1x128xf32>
    %153 = arith.mulf %144, %120 : vector<1x128xf32>
    %154 = arith.addf %152, %153 : vector<1x128xf32>
    %155 = arith.index_cast %c3_i32 : i32 to index
    %c0_56 = arith.constant 0 : index
    %156 = vector.load %arg8[%155, %c0_56] : memref<8x128xf32, #tpu.memory_space<vmem>>, vector<1x128xf32>
    tpu.vector_store %arg8[%155, %c0_56], %154 {strides = array<i32>} : memref<8x128xf32, #tpu.memory_space<vmem>>, vector<1x128xf32>,
    %c4_i32 = arith.constant 4 : i32
    %c0_57 = arith.constant 0 : index
    %c0_58 = arith.constant 0 : index
    %157 = vector.load %arg13[%c0_57, %c0_58] : memref<128x384xf32, #tpu.memory_space<vmem>>, vector<128x384xf32>
    %cst_59 = arith.constant dense<0.000000e+00> : vector<1x384xf32>
    %158 = tpu.matmul %154, %157, %cst_59 {dimension_numbers = #tpu.dot_dimension_numbers<[1], [0], [0], [1], [0, 0, 1, 1], [], []>} : vector<1x128xf32>, vector<128x384xf32>, vector<1x384xf32> -> vector<1x384xf32>
    %c0_60 = arith.constant 0 : index
    %c0_61 = arith.constant 0 : index
    %159 = vector.load %arg6[%c0_60, %c0_61] : memref<1x384xf32, #tpu.memory_space<vmem>>, vector<1x384xf32>
    %160 = arith.addf %158, %159 : vector<1x384xf32>
    %161 = arith.index_cast %c4_i32 : i32 to index
    %c0_62 = arith.constant 0 : index
    %162 = vector.load %arg12[%161, %c0_62] : memref<8x384xf32, #tpu.memory_space<vmem>>, vector<1x384xf32>
    %163 = vector.extract_strided_slice %162 {offsets = [0, 0], sizes = [1, 128], strides = [1, 1]} : vector<1x384xf32> to vector<1x128xf32>
    %164 = vector.extract_strided_slice %160 {offsets = [0, 0], sizes = [1, 128], strides = [1, 1]} : vector<1x384xf32> to vector<1x128xf32>
    %165 = arith.addf %163, %164 : vector<1x128xf32>
    %166 = arith.negf %165 : vector<1x128xf32>
    %167 = math.exp %166 : vector<1x128xf32>
    %cst_63 = arith.constant 1.000000e+00 : f32
    %168 = vector.broadcast %cst_63 : f32 to vector<1x128xf32>
    %169 = arith.addf %168, %167 : vector<1x128xf32>
    %170 = arith.divf %168, %169 : vector<1x128xf32>
    %171 = vector.extract_strided_slice %162 {offsets = [0, 128], sizes = [1, 128], strides = [1, 1]} : vector<1x384xf32> to vector<1x128xf32>
    %172 = vector.extract_strided_slice %160 {offsets = [0, 128], sizes = [1, 128], strides = [1, 1]} : vector<1x384xf32> to vector<1x128xf32>
    %173 = arith.addf %171, %172 : vector<1x128xf32>
    %174 = arith.negf %173 : vector<1x128xf32>
    %175 = math.exp %174 : vector<1x128xf32>
    %cst_64 = arith.constant 1.000000e+00 : f32
    %176 = vector.broadcast %cst_64 : f32 to vector<1x128xf32>
    %177 = arith.addf %176, %175 : vector<1x128xf32>
    %178 = arith.divf %176, %177 : vector<1x128xf32>
    %179 = vector.extract_strided_slice %162 {offsets = [0, 256], sizes = [1, 128], strides = [1, 1]} : vector<1x384xf32> to vector<1x128xf32>
    %180 = vector.extract_strided_slice %160 {offsets = [0, 256], sizes = [1, 128], strides = [1, 1]} : vector<1x384xf32> to vector<1x128xf32>
    %181 = arith.mulf %170, %180 : vector<1x128xf32>
    %182 = arith.addf %179, %181 : vector<1x128xf32>
    %183 = math.tanh %182 : vector<1x128xf32>
    %cst_65 = arith.constant 1.000000e+00 : f32
    %184 = vector.broadcast %cst_65 : f32 to vector<1x128xf32>
    %185 = arith.subf %184, %178 : vector<1x128xf32>
    %186 = arith.mulf %185, %183 : vector<1x128xf32>
    %187 = arith.mulf %178, %154 : vector<1x128xf32>
    %188 = arith.addf %186, %187 : vector<1x128xf32>
    %189 = arith.index_cast %c4_i32 : i32 to index
    %c0_66 = arith.constant 0 : index
    %190 = vector.load %arg8[%189, %c0_66] : memref<8x128xf32, #tpu.memory_space<vmem>>, vector<1x128xf32>
    tpu.vector_store %arg8[%189, %c0_66], %188 {strides = array<i32>} : memref<8x128xf32, #tpu.memory_space<vmem>>, vector<1x128xf32>,
    %c5_i32 = arith.constant 5 : i32
    %c0_67 = arith.constant 0 : index
    %c0_68 = arith.constant 0 : index
    %191 = vector.load %arg13[%c0_67, %c0_68] : memref<128x384xf32, #tpu.memory_space<vmem>>, vector<128x384xf32>
    %cst_69 = arith.constant dense<0.000000e+00> : vector<1x384xf32>
    %192 = tpu.matmul %188, %191, %cst_69 {dimension_numbers = #tpu.dot_dimension_numbers<[1], [0], [0], [1], [0, 0, 1, 1], [], []>} : vector<1x128xf32>, vector<128x384xf32>, vector<1x384xf32> -> vector<1x384xf32>
    %c0_70 = arith.constant 0 : index
    %c0_71 = arith.constant 0 : index
    %193 = vector.load %arg6[%c0_70, %c0_71] : memref<1x384xf32, #tpu.memory_space<vmem>>, vector<1x384xf32>
    %194 = arith.addf %192, %193 : vector<1x384xf32>
    %195 = arith.index_cast %c5_i32 : i32 to index
    %c0_72 = arith.constant 0 : index
    %196 = vector.load %arg12[%195, %c0_72] : memref<8x384xf32, #tpu.memory_space<vmem>>, vector<1x384xf32>
    %197 = vector.extract_strided_slice %196 {offsets = [0, 0], sizes = [1, 128], strides = [1, 1]} : vector<1x384xf32> to vector<1x128xf32>
    %198 = vector.extract_strided_slice %194 {offsets = [0, 0], sizes = [1, 128], strides = [1, 1]} : vector<1x384xf32> to vector<1x128xf32>
    %199 = arith.addf %197, %198 : vector<1x128xf32>
    %200 = arith.negf %199 : vector<1x128xf32>
    %201 = math.exp %200 : vector<1x128xf32>
    %cst_73 = arith.constant 1.000000e+00 : f32
    %202 = vector.broadcast %cst_73 : f32 to vector<1x128xf32>
    %203 = arith.addf %202, %201 : vector<1x128xf32>
    %204 = arith.divf %202, %203 : vector<1x128xf32>
    %205 = vector.extract_strided_slice %196 {offsets = [0, 128], sizes = [1, 128], strides = [1, 1]} : vector<1x384xf32> to vector<1x128xf32>
    %206 = vector.extract_strided_slice %194 {offsets = [0, 128], sizes = [1, 128], strides = [1, 1]} : vector<1x384xf32> to vector<1x128xf32>
    %207 = arith.addf %205, %206 : vector<1x128xf32>
    %208 = arith.negf %207 : vector<1x128xf32>
    %209 = math.exp %208 : vector<1x128xf32>
    %cst_74 = arith.constant 1.000000e+00 : f32
    %210 = vector.broadcast %cst_74 : f32 to vector<1x128xf32>
    %211 = arith.addf %210, %209 : vector<1x128xf32>
    %212 = arith.divf %210, %211 : vector<1x128xf32>
    %213 = vector.extract_strided_slice %196 {offsets = [0, 256], sizes = [1, 128], strides = [1, 1]} : vector<1x384xf32> to vector<1x128xf32>
    %214 = vector.extract_strided_slice %194 {offsets = [0, 256], sizes = [1, 128], strides = [1, 1]} : vector<1x384xf32> to vector<1x128xf32>
    %215 = arith.mulf %204, %214 : vector<1x128xf32>
    %216 = arith.addf %213, %215 : vector<1x128xf32>
    %217 = math.tanh %216 : vector<1x128xf32>
    %cst_75 = arith.constant 1.000000e+00 : f32
    %218 = vector.broadcast %cst_75 : f32 to vector<1x128xf32>
    %219 = arith.subf %218, %212 : vector<1x128xf32>
    %220 = arith.mulf %219, %217 : vector<1x128xf32>
    %221 = arith.mulf %212, %188 : vector<1x128xf32>
    %222 = arith.addf %220, %221 : vector<1x128xf32>
    %223 = arith.index_cast %c5_i32 : i32 to index
    %c0_76 = arith.constant 0 : index
    %224 = vector.load %arg8[%223, %c0_76] : memref<8x128xf32, #tpu.memory_space<vmem>>, vector<1x128xf32>
    tpu.vector_store %arg8[%223, %c0_76], %222 {strides = array<i32>} : memref<8x128xf32, #tpu.memory_space<vmem>>, vector<1x128xf32>,
    %c6_i32 = arith.constant 6 : i32
    %c0_77 = arith.constant 0 : index
    %c0_78 = arith.constant 0 : index
    %225 = vector.load %arg13[%c0_77, %c0_78] : memref<128x384xf32, #tpu.memory_space<vmem>>, vector<128x384xf32>
    %cst_79 = arith.constant dense<0.000000e+00> : vector<1x384xf32>
    %226 = tpu.matmul %222, %225, %cst_79 {dimension_numbers = #tpu.dot_dimension_numbers<[1], [0], [0], [1], [0, 0, 1, 1], [], []>} : vector<1x128xf32>, vector<128x384xf32>, vector<1x384xf32> -> vector<1x384xf32>
    %c0_80 = arith.constant 0 : index
    %c0_81 = arith.constant 0 : index
    %227 = vector.load %arg6[%c0_80, %c0_81] : memref<1x384xf32, #tpu.memory_space<vmem>>, vector<1x384xf32>
    %228 = arith.addf %226, %227 : vector<1x384xf32>
    %229 = arith.index_cast %c6_i32 : i32 to index
    %c0_82 = arith.constant 0 : index
    %230 = vector.load %arg12[%229, %c0_82] : memref<8x384xf32, #tpu.memory_space<vmem>>, vector<1x384xf32>
    %231 = vector.extract_strided_slice %230 {offsets = [0, 0], sizes = [1, 128], strides = [1, 1]} : vector<1x384xf32> to vector<1x128xf32>
    %232 = vector.extract_strided_slice %228 {offsets = [0, 0], sizes = [1, 128], strides = [1, 1]} : vector<1x384xf32> to vector<1x128xf32>
    %233 = arith.addf %231, %232 : vector<1x128xf32>
    %234 = arith.negf %233 : vector<1x128xf32>
    %235 = math.exp %234 : vector<1x128xf32>
    %cst_83 = arith.constant 1.000000e+00 : f32
    %236 = vector.broadcast %cst_83 : f32 to vector<1x128xf32>
    %237 = arith.addf %236, %235 : vector<1x128xf32>
    %238 = arith.divf %236, %237 : vector<1x128xf32>
    %239 = vector.extract_strided_slice %230 {offsets = [0, 128], sizes = [1, 128], strides = [1, 1]} : vector<1x384xf32> to vector<1x128xf32>
    %240 = vector.extract_strided_slice %228 {offsets = [0, 128], sizes = [1, 128], strides = [1, 1]} : vector<1x384xf32> to vector<1x128xf32>
    %241 = arith.addf %239, %240 : vector<1x128xf32>
    %242 = arith.negf %241 : vector<1x128xf32>
    %243 = math.exp %242 : vector<1x128xf32>
    %cst_84 = arith.constant 1.000000e+00 : f32
    %244 = vector.broadcast %cst_84 : f32 to vector<1x128xf32>
    %245 = arith.addf %244, %243 : vector<1x128xf32>
    %246 = arith.divf %244, %245 : vector<1x128xf32>
    %247 = vector.extract_strided_slice %230 {offsets = [0, 256], sizes = [1, 128], strides = [1, 1]} : vector<1x384xf32> to vector<1x128xf32>
    %248 = vector.extract_strided_slice %228 {offsets = [0, 256], sizes = [1, 128], strides = [1, 1]} : vector<1x384xf32> to vector<1x128xf32>
    %249 = arith.mulf %238, %248 : vector<1x128xf32>
    %250 = arith.addf %247, %249 : vector<1x128xf32>
    %251 = math.tanh %250 : vector<1x128xf32>
    %cst_85 = arith.constant 1.000000e+00 : f32
    %252 = vector.broadcast %cst_85 : f32 to vector<1x128xf32>
    %253 = arith.subf %252, %246 : vector<1x128xf32>
    %254 = arith.mulf %253, %251 : vector<1x128xf32>
    %255 = arith.mulf %246, %222 : vector<1x128xf32>
    %256 = arith.addf %254, %255 : vector<1x128xf32>
    %257 = arith.index_cast %c6_i32 : i32 to index
    %c0_86 = arith.constant 0 : index
    %258 = vector.load %arg8[%257, %c0_86] : memref<8x128xf32, #tpu.memory_space<vmem>>, vector<1x128xf32>
    tpu.vector_store %arg8[%257, %c0_86], %256 {strides = array<i32>} : memref<8x128xf32, #tpu.memory_space<vmem>>, vector<1x128xf32>,
    %c7_i32 = arith.constant 7 : i32
    %c0_87 = arith.constant 0 : index
    %c0_88 = arith.constant 0 : index
    %259 = vector.load %arg13[%c0_87, %c0_88] : memref<128x384xf32, #tpu.memory_space<vmem>>, vector<128x384xf32>
    %cst_89 = arith.constant dense<0.000000e+00> : vector<1x384xf32>
    %260 = tpu.matmul %256, %259, %cst_89 {dimension_numbers = #tpu.dot_dimension_numbers<[1], [0], [0], [1], [0, 0, 1, 1], [], []>} : vector<1x128xf32>, vector<128x384xf32>, vector<1x384xf32> -> vector<1x384xf32>
    %c0_90 = arith.constant 0 : index
    %c0_91 = arith.constant 0 : index
    %261 = vector.load %arg6[%c0_90, %c0_91] : memref<1x384xf32, #tpu.memory_space<vmem>>, vector<1x384xf32>
    %262 = arith.addf %260, %261 : vector<1x384xf32>
    %263 = arith.index_cast %c7_i32 : i32 to index
    %c0_92 = arith.constant 0 : index
    %264 = vector.load %arg12[%263, %c0_92] : memref<8x384xf32, #tpu.memory_space<vmem>>, vector<1x384xf32>
    %265 = vector.extract_strided_slice %264 {offsets = [0, 0], sizes = [1, 128], strides = [1, 1]} : vector<1x384xf32> to vector<1x128xf32>
    %266 = vector.extract_strided_slice %262 {offsets = [0, 0], sizes = [1, 128], strides = [1, 1]} : vector<1x384xf32> to vector<1x128xf32>
    %267 = arith.addf %265, %266 : vector<1x128xf32>
    %268 = arith.negf %267 : vector<1x128xf32>
    %269 = math.exp %268 : vector<1x128xf32>
    %cst_93 = arith.constant 1.000000e+00 : f32
    %270 = vector.broadcast %cst_93 : f32 to vector<1x128xf32>
    %271 = arith.addf %270, %269 : vector<1x128xf32>
    %272 = arith.divf %270, %271 : vector<1x128xf32>
    %273 = vector.extract_strided_slice %264 {offsets = [0, 128], sizes = [1, 128], strides = [1, 1]} : vector<1x384xf32> to vector<1x128xf32>
    %274 = vector.extract_strided_slice %262 {offsets = [0, 128], sizes = [1, 128], strides = [1, 1]} : vector<1x384xf32> to vector<1x128xf32>
    %275 = arith.addf %273, %274 : vector<1x128xf32>
    %276 = arith.negf %275 : vector<1x128xf32>
    %277 = math.exp %276 : vector<1x128xf32>
    %cst_94 = arith.constant 1.000000e+00 : f32
    %278 = vector.broadcast %cst_94 : f32 to vector<1x128xf32>
    %279 = arith.addf %278, %277 : vector<1x128xf32>
    %280 = arith.divf %278, %279 : vector<1x128xf32>
    %281 = vector.extract_strided_slice %264 {offsets = [0, 256], sizes = [1, 128], strides = [1, 1]} : vector<1x384xf32> to vector<1x128xf32>
    %282 = vector.extract_strided_slice %262 {offsets = [0, 256], sizes = [1, 128], strides = [1, 1]} : vector<1x384xf32> to vector<1x128xf32>
    %283 = arith.mulf %272, %282 : vector<1x128xf32>
    %284 = arith.addf %281, %283 : vector<1x128xf32>
    %285 = math.tanh %284 : vector<1x128xf32>
    %cst_95 = arith.constant 1.000000e+00 : f32
    %286 = vector.broadcast %cst_95 : f32 to vector<1x128xf32>
    %287 = arith.subf %286, %280 : vector<1x128xf32>
    %288 = arith.mulf %287, %285 : vector<1x128xf32>
    %289 = arith.mulf %280, %256 : vector<1x128xf32>
    %290 = arith.addf %288, %289 : vector<1x128xf32>
    %291 = arith.index_cast %c7_i32 : i32 to index
    %c0_96 = arith.constant 0 : index
    %292 = vector.load %arg8[%291, %c0_96] : memref<8x128xf32, #tpu.memory_space<vmem>>, vector<1x128xf32>
    tpu.vector_store %arg8[%291, %c0_96], %290 {strides = array<i32>} : memref<8x128xf32, #tpu.memory_space<vmem>>, vector<1x128xf32>,
    %c8_i32 = arith.constant 8 : i32
    %c0_97 = arith.constant 0 : index
    %c0_98 = arith.constant 0 : index
    %293 = vector.load %arg9[%c0_97, %c0_98] : memref<1x128xf32, #tpu.memory_space<vmem>>, vector<1x128xf32>
    tpu.vector_store %arg9[%c0_97, %c0_98], %290 {strides = array<i32>} : memref<1x128xf32, #tpu.memory_space<vmem>>, vector<1x128xf32>,
    return
  }
}

</mosaic_0001>

<llo_original>
// kernel: tpu_custom_call.1
$region0: #{tpu_custom_call.1}
  #allocation0 [shape = 'u32[]', space=smem, size = 0x4, offset = 0x4, fixed_abs, tag = 'smem constant byte address 0x4 - core index']
  #allocation1 [shape = 'u32[72,128]{1,0:T(1,128)}', space=vmem, size = 0x9000, scoped, tag = 'internal scratch']
  #allocation2 [shape = 'f32[16,128]{1,0:T(8,128)}', space=vmem, size = 0x2000, scoped, tag = 'scratch operand']
  #allocation3 [shape = 'f32[8,128]{1,0:T(8,128)}', space=vmem, size = 0x1000, scoped, tag = 'scratch operand']
  #allocation4 [shape = 'f32[8,384]{1,0:T(8,128)}', space=vmem, size = 0x3000, scoped, tag = 'scratch operand']
  #allocation5 [shape = 'f32[128,384]{1,0:T(8,128)}', space=vmem, size = 0x30000, scoped, tag = 'scratch operand']
  #allocation6 [shape = 's32[1]{0}', space=sflag, size = 0x4, scoped, tag = 'scratch operand']
  #allocation7 [shape = 's32[1]{0}', space=sflag, size = 0x4, scoped, tag = 'scratch operand']
  #allocation16 [shape = 's32[]', space=sflag, size = 0x4, offset = 0, fixed_abs, tag = 'sflag constant byte address 0x0 - dummy sync flag']
  #allocation17 [shape = 's32[]', space=sflag, size = 0x4, offset = 0, fixed_abs, tag = 'sflag constant byte address 0x0 - dummy sync flag']
  #allocation18 [shape = 'u32[]', space=smem, size = 0x4, offset = 0x44, fixed_abs, tag = 'smem constant byte address 0x44 - assertion arg 0']
  #allocation19 [shape = 'u32[]', space=smem, size = 0x4, offset = 0x48, fixed_abs, tag = 'smem constant byte address 0x48 - assertion arg 1']
  #allocation20 [shape = 's32[]', space=sflag, size = 0x4, offset = 0, fixed_abs, tag = 'sflag constant byte address 0x0 - dummy sync flag']
  #allocation21 [shape = 's32[]', space=sflag, size = 0x4, offset = 0, fixed_abs, tag = 'sflag constant byte address 0x0 - dummy sync flag']
  %s0 = inlined_call_operand.vmem [shape: s32[8], index: 0, kind: input, shape index: {}]
  %s1 = inlined_call_operand.vmem [shape: s32[8,1], index: 1, kind: input, shape index: {}]
  %s2 = inlined_call_operand.hbm [shape: f32[16,128], index: 2, kind: input, shape index: {}]
  %s3 = inlined_call_operand.hbm [shape: f32[128,384], index: 3, kind: input, shape index: {}]
  %s4 = inlined_call_operand.hbm [shape: f32[128,384], index: 4, kind: input, shape index: {}]
  %s5 = inlined_call_operand.vmem [shape: f32[1,384], index: 5, kind: input, shape index: {}]
  %s6 = inlined_call_operand.vmem [shape: f32[1,384], index: 6, kind: input, shape index: {}]
  %s7 = inlined_call_operand.vmem [shape: f32[1,128], index: 7, kind: input, shape index: {}]
  %s8 = inlined_call_operand.hbm [shape: f32[8,128], index: 8, kind: output, shape index: {0}]
  %s9 = inlined_call_operand.hbm [shape: f32[1,128], index: 9, kind: output, shape index: {1}]
  %10 = xla_tuple %s8, %s9
  %s11 = sld [smem:[#allocation0]]
  $region58: #{tpu_custom_call.1} parent=0
    _
  %s13 = ssub.s32 1, %s11
  %s14 = scalar_select 0, %s13, %s11
  $region1: #{tpu_custom_call.1} parent=0
    #allocation8 [shape = 'u8[512]{0}', space=smem, size = 0x200, scoped, tag = 'input window, operand 0, single buffered']
    #allocation9 [shape = 's32[1]{0}', space=sflag, size = 0x4, scoped, tag = 'scoped memory for tpu_custom_call.1']
    #allocation10 [shape = 's32[1]{0}', space=sflag, size = 0x4, scoped, tag = 'scoped memory for tpu_custom_call.1']
    #allocation11 [shape = 's32[1]{0}', space=sflag, size = 0x4, scoped, tag = 'scoped memory for tpu_custom_call.1']
    #allocation12 [shape = 'u8[196608]{0}', space=vmem, size = 0x30000, scoped, tag = 'input window, operand 3, single buffered']
    #allocation13 [shape = 'u8[4096]{0}', space=vmem, size = 0x1000, scoped, tag = 'output window, operand 0, single buffered']
    #allocation14 [shape = 'u8[512]{0}', space=vmem, size = 0x400, scoped, tag = 'output window, operand 1, single buffered']
    #allocation15 [shape = 's32[1]{0}', space=sflag, size = 0x4, scoped, tag = 'scoped memory for tpu_custom_call.1']
    %15 = vsyncpa [#allocation11], 0
    %16 = vsyncpa [#allocation9], 0
    %17 = vsyncpa [#allocation10], 0
    %18 = vsyncpa [#allocation15], 0
    // Predicated region
    $region2: #{tpu_custom_call.1} parent=1 // pred_check
      _
    $region3: #{tpu_custom_call.1} parent=1 // pred_check_branch
      %20 = sbr.rel (0) target = $region5
    $region4: #{tpu_custom_call.1} parent=1 // pred_region
      %22 = vsyncadd [#allocation11], 0
      %s24 = sshll.u32 %s0, 4
      %s25 = int_to_ptr.vmem [resolvable:$true] %s24
      %27 = dma.vmem_to_smem %s25, 16, [#allocation8], [#allocation11]
    $region5: #{tpu_custom_call.1} parent=1 // pred_fallthru
      _
    // Predicated region
    $region6: #{tpu_custom_call.1} parent=1 // pred_check
      _
    $region7: #{tpu_custom_call.1} parent=1 // pred_check_branch
      %29 = sbr.rel (0) target = $region9
    $region8: #{tpu_custom_call.1} parent=1 // pred_region
      _
    $region9: #{tpu_custom_call.1} parent=1 // pred_fallthru
      _
    // Predicated region
    $region10: #{tpu_custom_call.1} parent=1 // pred_check
      _
    $region11: #{tpu_custom_call.1} parent=1 // pred_check_branch
      %31 = sbr.rel (0) target = $region13
    $region12: #{tpu_custom_call.1} parent=1 // pred_region
      %33 = vsyncadd [#allocation9], 0
      %s34 = sshll.u32 %s3, 4
      %s35 = int_to_ptr.hbm [resolvable:$true] %s34
      %s36 = sshll.u32 [#allocation12], 4
      %s37 = int_to_ptr.vmem [resolvable:$true] %s36
      %42 = dma.hbm_to_vmem [thread:$0]  %s35, 6144, %s37, [#allocation9], 384, 384, 24
    $region13: #{tpu_custom_call.1} parent=1 // pred_fallthru
      _
    // Predicated region
    $region14: #{tpu_custom_call.1} parent=1 // pred_check
      _
    $region15: #{tpu_custom_call.1} parent=1 // pred_check_branch
      %44 = sbr.rel (0) target = $region17
    $region16: #{tpu_custom_call.1} parent=1 // pred_region
      _
    $region17: #{tpu_custom_call.1} parent=1 // pred_fallthru
      _
    // Predicated region
    $region18: #{tpu_custom_call.1} parent=1 // pred_check
      _
    $region19: #{tpu_custom_call.1} parent=1 // pred_check_branch
      %46 = sbr.rel (0) target = $region21
    $region20: #{tpu_custom_call.1} parent=1 // pred_region
      _
    $region21: #{tpu_custom_call.1} parent=1 // pred_fallthru
      _
    // Predicated region
    $region22: #{tpu_custom_call.1} parent=1 // pred_check
      _
    $region23: #{tpu_custom_call.1} parent=1 // pred_check_branch
      %48 = sbr.rel (0) target = $region25
    $region24: #{tpu_custom_call.1} parent=1 // pred_region
      _
    $region25: #{tpu_custom_call.1} parent=1 // pred_fallthru
      _
    // Predicated region
    $region26: #{tpu_custom_call.1} parent=1 // pred_check
      _
    $region27: #{tpu_custom_call.1} parent=1 // pred_check_branch
      %50 = sbr.rel (0) target = $region29
    $region28: #{tpu_custom_call.1} parent=1 // pred_region
      %52 = dma.done [#allocation11], 16
    $region29: #{tpu_custom_call.1} parent=1 // pred_fallthru
      _
    // Predicated region
    $region30: #{tpu_custom_call.1} parent=1 // pred_check
      _
    $region31: #{tpu_custom_call.1} parent=1 // pred_check_branch
      %54 = sbr.rel (0) target = $region33
    $region32: #{tpu_custom_call.1} parent=1 // pred_region
      %56 = dma.done [#allocation9], 6144
    $region33: #{tpu_custom_call.1} parent=1 // pred_fallthru
      _
    %57 = sfence
    // Predicated region
    $region34: #{tpu_custom_call.1} parent=1 // pred_check
      _
    $region35: #{tpu_custom_call.1} parent=1 // pred_check_branch
      %59 = sbr.rel target = $region37
    $region36: #{tpu_custom_call.1} parent=1 // pred_region
      %60 = sst [smem:[#allocation18]] [#allocation17]
      %61 = sst [smem:[#allocation19]] [#allocation16]
    $region37: #{tpu_custom_call.1} parent=1 // pred_fallthru
      _
    %63 = shalt.err (0)
    %s65 = sshll.u32 %s4, 4
    %s66 = int_to_ptr.hbm [resolvable:$true] %s65
    %s67 = sshll.u32 [#allocation5], 4
    %s68 = int_to_ptr.vmem [resolvable:$true] %s67
    %70 = dma.hbm_to_vmem [thread:$0]  %s66, 6144, %s68, [#allocation7]
    // Predicated region
    $region38: #{tpu_custom_call.1} parent=1 // pred_check
      _
    $region39: #{tpu_custom_call.1} parent=1 // pred_check_branch
      %72 = sbr.rel target = $region41
    $region40: #{tpu_custom_call.1} parent=1 // pred_region
      %73 = sst [smem:[#allocation18]] [#allocation21]
      %74 = sst [smem:[#allocation19]] [#allocation20]
    $region41: #{tpu_custom_call.1} parent=1 // pred_fallthru
      _
    %76 = shalt.err (0)
    %s78 = sshll.u32 %s2, 4
    %s79 = int_to_ptr.hbm [resolvable:$true] %s78
    %s80 = sshll.u32 [#allocation2], 4
    %s81 = int_to_ptr.vmem [resolvable:$true] %s80
    %83 = dma.hbm_to_vmem [thread:$0]  %s79, 256, %s81, [#allocation6]
    %s84 = smul.u32 16, 1
    %s85 = sshll.u32 %s84, 4
    %86 = dma.done [#allocation6], %s85
    %v87 = vld [vmem:[%s1] sm:$0xff]
    %vm88 = vcmp.gt.s32.totalorder %v87, 0
    %v89 = vsel %vm88, %v87, 0
    %vm90 = vcmp.lt.s32.totalorder %v89, 15
    %v91 = vsel %vm90, %v89, 15
    %v92 = vlaneseq
    %v93 = vand.u32 %v92, 127
    %94 = vset.pattern.permute.xlu0 0
    %95 = vperm.xlu0 %94, %v91
    %v96 = vpop.permute.xlu0 %95
    %vm97 = vcmp.eq.s32.totalorder %v96, %v93
    %v98 = vsel %vm97, 1, 0
    %v99 = vcvt.s32.f32 %v98
    %v100 = vld [vmem:[#allocation2] sm:$0xff]
    %v101 = vld [vmem:[#allocation2 + $0x8] sm:$0xff]
    %vm102 = vcmask 130048
    %v104 = vsel %vm102, %v99, 0
    %106 = vmatpush.msra.mxu0 0.0
    %107 = vmatpush.msra.mxu0 0.0
    %108 = vmatpush.msra.mxu0 0.0
    %109 = vmatpush.msra.mxu0 0.0
    %110 = vmatpush.msra.mxu0 0.0
    %111 = vmatpush.msra.mxu0 0.0
    %112 = vmatpush.msra.mxu0 0.0
    %113 = vmatpush.msra.mxu0 0.0
    %114 = vmatpush.msra.mxu0 0.0
    %115 = vmatpush.msra.mxu0 0.0
    %116 = vmatpush.msra.mxu0 0.0
    %117 = vmatpush.msra.mxu0 0.0
    %118 = vmatpush.msra.mxu0 0.0
    %119 = vmatpush.msra.mxu0 0.0
    %120 = vmatpush.msra.mxu0 %v101
    %121 = vmatpush.msra.mxu0 %v100
    %122 = vmatmul.f32.gmra.mxu0 %v104
    %v123 = vpop.f32.mrf.mxu0
    %v124 = vadd.f32 0.0, %v123
    %125 = vdwg.mxu0
    %126 = vst [vmem:[#allocation3] sm:$0xff] %v124
    %v127 = vld [vmem:[#allocation3] sm:$0xff]
    %v128 = vld [vmem:[#allocation12] sm:$0xff]
    %v129 = vld [vmem:[#allocation12 + $0x8] sm:$0xff]
    %v130 = vld [vmem:[#allocation12 + $0x10] sm:$0xff]
    %v131 = vld [vmem:[#allocation12 + $0x18] sm:$0xff]
    %v132 = vld [vmem:[#allocation12 + $0x20] sm:$0xff]
    %v133 = vld [vmem:[#allocation12 + $0x28] sm:$0xff]
    %v134 = vld [vmem:[#allocation12 + $0x30] sm:$0xff]
    %v135 = vld [vmem:[#allocation12 + $0x38] sm:$0xff]
    %v136 = vld [vmem:[#allocation12 + $0x40] sm:$0xff]
    %v137 = vld [vmem:[#allocation12 + $0x48] sm:$0xff]
    %v138 = vld [vmem:[#allocation12 + $0x50] sm:$0xff]
    %v139 = vld [vmem:[#allocation12 + $0x58] sm:$0xff]
    %v140 = vld [vmem:[#allocation12 + $0x60] sm:$0xff]
    %v141 = vld [vmem:[#allocation12 + $0x68] sm:$0xff]
    %v142 = vld [vmem:[#allocation12 + $0x70] sm:$0xff]
    %v143 = vld [vmem:[#allocation12 + $0x78] sm:$0xff]
    %v144 = vld [vmem:[#allocation12 + $0x80] sm:$0xff]
    %v145 = vld [vmem:[#allocation12 + $0x88] sm:$0xff]
    %v146 = vld [vmem:[#allocation12 + $0x90] sm:$0xff]
    %v147 = vld [vmem:[#allocation12 + $0x98] sm:$0xff]
    %v148 = vld [vmem:[#allocation12 + $0xa0] sm:$0xff]
    %v149 = vld [vmem:[#allocation12 + $0xa8] sm:$0xff]
    %v150 = vld [vmem:[#allocation12 + $0xb0] sm:$0xff]
    %v151 = vld [vmem:[#allocation12 + $0xb8] sm:$0xff]
    %v152 = vld [vmem:[#allocation12 + $0xc0] sm:$0xff]
    %v153 = vld [vmem:[#allocation12 + $0xc8] sm:$0xff]
    %v154 = vld [vmem:[#allocation12 + $0xd0] sm:$0xff]
    %v155 = vld [vmem:[#allocation12 + $0xd8] sm:$0xff]
    %v156 = vld [vmem:[#allocation12 + $0xe0] sm:$0xff]
    %v157 = vld [vmem:[#allocation12 + $0xe8] sm:$0xff]
    %v158 = vld [vmem:[#allocation12 + $0xf0] sm:$0xff]
    %v159 = vld [vmem:[#allocation12 + $0xf8] sm:$0xff]
    %v160 = vld [vmem:[#allocation12 + $0x100] sm:$0xff]
    %v161 = vld [vmem:[#allocation12 + $0x108] sm:$0xff]
    %v162 = vld [vmem:[#allocation12 + $0x110] sm:$0xff]
    %v163 = vld [vmem:[#allocation12 + $0x118] sm:$0xff]
    %v164 = vld [vmem:[#allocation12 + $0x120] sm:$0xff]
    %v165 = vld [vmem:[#allocation12 + $0x128] sm:$0xff]
    %v166 = vld [vmem:[#allocation12 + $0x130] sm:$0xff]
    %v167 = vld [vmem:[#allocation12 + $0x138] sm:$0xff]
    %v168 = vld [vmem:[#allocation12 + $0x140] sm:$0xff]
    %v169 = vld [vmem:[#allocation12 + $0x148] sm:$0xff]
    %v170 = vld [vmem:[#allocation12 + $0x150] sm:$0xff]
    %v171 = vld [vmem:[#allocation12 + $0x158] sm:$0xff]
    %v172 = vld [vmem:[#allocation12 + $0x160] sm:$0xff]
    %v173 = vld [vmem:[#allocation12 + $0x168] sm:$0xff]
    %v174 = vld [vmem:[#allocation12 + $0x170] sm:$0xff]
    %v175 = vld [vmem:[#allocation12 + $0x178] sm:$0xff]
    %v176 = vld [vmem:[%s5] sm:$0x7]
    %v178 = vperm.slane %v176, 0
    %v179 = vperm.slane %v176, 1
    %v180 = vperm.slane %v176, 2
    %184 = vmatpush.msra.mxu0 %v173
    %185 = vmatpush.msra.mxu0 %v170
    %186 = vmatpush.msra.mxu0 %v167
    %187 = vmatpush.msra.mxu0 %v164
    %188 = vmatpush.msra.mxu0 %v161
    %189 = vmatpush.msra.mxu0 %v158
    %190 = vmatpush.msra.mxu0 %v155
    %191 = vmatpush.msra.mxu0 %v152
    %192 = vmatpush.msra.mxu0 %v149
    %193 = vmatpush.msra.mxu0 %v146
    %194 = vmatpush.msra.mxu0 %v143
    %195 = vmatpush.msra.mxu0 %v140
    %196 = vmatpush.msra.mxu0 %v137
    %197 = vmatpush.msra.mxu0 %v134
    %198 = vmatpush.msra.mxu0 %v131
    %199 = vmatpush.msra.mxu0 %v128
    %200 = vmatmul.f32.gmra.mxu0 %v127
    %v201 = vpop.f32.mrf.mxu0
    %v202 = vadd.f32 %v178, %v201
    %203 = vdwg.mxu0
    %204 = vmatpush.msra.mxu0 %v174
    %205 = vmatpush.msra.mxu0 %v171
    %206 = vmatpush.msra.mxu0 %v168
    %207 = vmatpush.msra.mxu0 %v165
    %208 = vmatpush.msra.mxu0 %v162
    %209 = vmatpush.msra.mxu0 %v159
    %210 = vmatpush.msra.mxu0 %v156
    %211 = vmatpush.msra.mxu0 %v153
    %212 = vmatpush.msra.mxu0 %v150
    %213 = vmatpush.msra.mxu0 %v147
    %214 = vmatpush.msra.mxu0 %v144
    %215 = vmatpush.msra.mxu0 %v141
    %216 = vmatpush.msra.mxu0 %v138
    %217 = vmatpush.msra.mxu0 %v135
    %218 = vmatpush.msra.mxu0 %v132
    %219 = vmatpush.msra.mxu0 %v129
    %220 = vmatmul.f32.gmra.mxu0 %v127
    %v221 = vpop.f32.mrf.mxu0
    %v222 = vadd.f32 %v179, %v221
    %223 = vdwg.mxu0
    %224 = vmatpush.msra.mxu0 %v175
    %225 = vmatpush.msra.mxu0 %v172
    %226 = vmatpush.msra.mxu0 %v169
    %227 = vmatpush.msra.mxu0 %v166
    %228 = vmatpush.msra.mxu0 %v163
    %229 = vmatpush.msra.mxu0 %v160
    %230 = vmatpush.msra.mxu0 %v157
    %231 = vmatpush.msra.mxu0 %v154
    %232 = vmatpush.msra.mxu0 %v151
    %233 = vmatpush.msra.mxu0 %v148
    %234 = vmatpush.msra.mxu0 %v145
    %235 = vmatpush.msra.mxu0 %v142
    %236 = vmatpush.msra.mxu0 %v139
    %237 = vmatpush.msra.mxu0 %v136
    %238 = vmatpush.msra.mxu0 %v133
    %239 = vmatpush.msra.mxu0 %v130
    %240 = vmatmul.f32.gmra.mxu0 %v127
    %v241 = vpop.f32.mrf.mxu0
    %v242 = vadd.f32 %v180, %v241
    %243 = vdwg.mxu0
    %244 = vst [vmem:[#allocation4] sm:$0xff] %v202
    %245 = vst [vmem:[#allocation4 + $0x8] sm:$0xff] %v222
    %246 = vst [vmem:[#allocation4 + $0x10] sm:$0xff] %v242
    %s247 = smul.u32 8, 16
    %s248 = smul.u32 %s247, 3
    %s249 = sshll.u32 %s248, 4
    %250 = dma.done [#allocation7], %s249
    %v251 = vld [vmem:[%s7] sm:$0x1]
    %v252 = vld [vmem:[#allocation5] sm:$0xff]
    %v253 = vld [vmem:[#allocation5 + $0x8] sm:$0xff]
    %v254 = vld [vmem:[#allocation5 + $0x10] sm:$0xff]
    %v255 = vld [vmem:[#allocation5 + $0x18] sm:$0xff]
    %v256 = vld [vmem:[#allocation5 + $0x20] sm:$0xff]
    %v257 = vld [vmem:[#allocation5 + $0x28] sm:$0xff]
    %v258 = vld [vmem:[#allocation5 + $0x30] sm:$0xff]
    %v259 = vld [vmem:[#allocation5 + $0x38] sm:$0xff]
    %v260 = vld [vmem:[#allocation5 + $0x40] sm:$0xff]
    %v261 = vld [vmem:[#allocation5 + $0x48] sm:$0xff]
    %v262 = vld [vmem:[#allocation5 + $0x50] sm:$0xff]
    %v263 = vld [vmem:[#allocation5 + $0x58] sm:$0xff]
    %v264 = vld [vmem:[#allocation5 + $0x60] sm:$0xff]
    %v265 = vld [vmem:[#allocation5 + $0x68] sm:$0xff]
    %v266 = vld [vmem:[#allocation5 + $0x70] sm:$0xff]
    %v267 = vld [vmem:[#allocation5 + $0x78] sm:$0xff]
    %v268 = vld [vmem:[#allocation5 + $0x80] sm:$0xff]
    %v269 = vld [vmem:[#allocation5 + $0x88] sm:$0xff]
    %v270 = vld [vmem:[#allocation5 + $0x90] sm:$0xff]
    %v271 = vld [vmem:[#allocation5 + $0x98] sm:$0xff]
    %v272 = vld [vmem:[#allocation5 + $0xa0] sm:$0xff]
    %v273 = vld [vmem:[#allocation5 + $0xa8] sm:$0xff]
    %v274 = vld [vmem:[#allocation5 + $0xb0] sm:$0xff]
    %v275 = vld [vmem:[#allocation5 + $0xb8] sm:$0xff]
    %v276 = vld [vmem:[#allocation5 + $0xc0] sm:$0xff]
    %v277 = vld [vmem:[#allocation5 + $0xc8] sm:$0xff]
    %v278 = vld [vmem:[#allocation5 + $0xd0] sm:$0xff]
    %v279 = vld [vmem:[#allocation5 + $0xd8] sm:$0xff]
    %v280 = vld [vmem:[#allocation5 + $0xe0] sm:$0xff]
    %v281 = vld [vmem:[#allocation5 + $0xe8] sm:$0xff]
    %v282 = vld [vmem:[#allocation5 + $0xf0] sm:$0xff]
    %v283 = vld [vmem:[#allocation5 + $0xf8] sm:$0xff]
    %v284 = vld [vmem:[#allocation5 + $0x100] sm:$0xff]
    %v285 = vld [vmem:[#allocation5 + $0x108] sm:$0xff]
    %v286 = vld [vmem:[#allocation5 + $0x110] sm:$0xff]
    %v287 = vld [vmem:[#allocation5 + $0x118] sm:$0xff]
    %v288 = vld [vmem:[#allocation5 + $0x120] sm:$0xff]
    %v289 = vld [vmem:[#allocation5 + $0x128] sm:$0xff]
    %v290 = vld [vmem:[#allocation5 + $0x130] sm:$0xff]
    %v291 = vld [vmem:[#allocation5 + $0x138] sm:$0xff]
    %v292 = vld [vmem:[#allocation5 + $0x140] sm:$0xff]
    %v293 = vld [vmem:[#allocation5 + $0x148] sm:$0xff]
    %v294 = vld [vmem:[#allocation5 + $0x150] sm:$0xff]
    %v295 = vld [vmem:[#allocation5 + $0x158] sm:$0xff]
    %v296 = vld [vmem:[#allocation5 + $0x160] sm:$0xff]
    %v297 = vld [vmem:[#allocation5 + $0x168] sm:$0xff]
    %v298 = vld [vmem:[#allocation5 + $0x170] sm:$0xff]
    %v299 = vld [vmem:[#allocation5 + $0x178] sm:$0xff]
    %v300 = vld [vmem:[%s6] sm:$0x7]
    %v302 = vperm.slane %v300, 0
    %v303 = vperm.slane %v300, 1
    %v304 = vperm.slane %v300, 2
    %308 = vmatpush.msra.mxu0 %v297
    %309 = vmatpush.msra.mxu0 %v294
    %310 = vmatpush.msra.mxu0 %v291
    %311 = vmatpush.msra.mxu0 %v288
    %312 = vmatpush.msra.mxu0 %v285
    %313 = vmatpush.msra.mxu0 %v282
    %314 = vmatpush.msra.mxu0 %v279
    %315 = vmatpush.msra.mxu0 %v276
    %316 = vmatpush.msra.mxu0 %v273
    %317 = vmatpush.msra.mxu0 %v270
    %318 = vmatpush.msra.mxu0 %v267
    %319 = vmatpush.msra.mxu0 %v264
    %320 = vmatpush.msra.mxu0 %v261
    %321 = vmatpush.msra.mxu0 %v258
    %322 = vmatpush.msra.mxu0 %v255
    %323 = vmatpush.msra.mxu0 %v252
    %324 = vmatmul.f32.gmra.mxu0 %v251
    %v325 = vpop.f32.mrf.mxu0
    %v326 = vadd.f32 %v302, %v325
    %327 = vdwg.mxu0
    %328 = vmatpush.msra.mxu0 %v298
    %329 = vmatpush.msra.mxu0 %v295
    %330 = vmatpush.msra.mxu0 %v292
    %331 = vmatpush.msra.mxu0 %v289
    %332 = vmatpush.msra.mxu0 %v286
    %333 = vmatpush.msra.mxu0 %v283
    %334 = vmatpush.msra.mxu0 %v280
    %335 = vmatpush.msra.mxu0 %v277
    %336 = vmatpush.msra.mxu0 %v274
    %337 = vmatpush.msra.mxu0 %v271
    %338 = vmatpush.msra.mxu0 %v268
    %339 = vmatpush.msra.mxu0 %v265
    %340 = vmatpush.msra.mxu0 %v262
    %341 = vmatpush.msra.mxu0 %v259
    %342 = vmatpush.msra.mxu0 %v256
    %343 = vmatpush.msra.mxu0 %v253
    %344 = vmatmul.f32.gmra.mxu0 %v251
    %v345 = vpop.f32.mrf.mxu0
    %v346 = vadd.f32 %v303, %v345
    %347 = vdwg.mxu0
    %348 = vmatpush.msra.mxu0 %v299
    %349 = vmatpush.msra.mxu0 %v296
    %350 = vmatpush.msra.mxu0 %v293
    %351 = vmatpush.msra.mxu0 %v290
    %352 = vmatpush.msra.mxu0 %v287
    %353 = vmatpush.msra.mxu0 %v284
    %354 = vmatpush.msra.mxu0 %v281
    %355 = vmatpush.msra.mxu0 %v278
    %356 = vmatpush.msra.mxu0 %v275
    %357 = vmatpush.msra.mxu0 %v272
    %358 = vmatpush.msra.mxu0 %v269
    %359 = vmatpush.msra.mxu0 %v266
    %360 = vmatpush.msra.mxu0 %v263
    %361 = vmatpush.msra.mxu0 %v260
    %362 = vmatpush.msra.mxu0 %v257
    %363 = vmatpush.msra.mxu0 %v254
    %364 = vmatmul.f32.gmra.mxu0 %v251
    %v365 = vpop.f32.mrf.mxu0
    %v366 = vadd.f32 %v304, %v365
    %367 = vdwg.mxu0
    %v368 = vld [vmem:[#allocation4] ss:$8 sm:$0x7]
    %v369 = vadd.f32 %v368, %v326
    %v370 = vxor.u32 %v369, 2147483648
    %v371 = vmul.f32 %v370, 1.442695
    %v372 = vpow.pop %v371
    %v373 = vadd.f32 %v372, 1.0
    %v374 = vrcp.pop %v373
    %v375 = vmul.f32 %v373, %v374
    %v376 = vsub.f32 1.0, %v375
    %v377 = vmul.f32 %v374, %v376
    %v378 = vadd.f32 %v374, %v377
    %vm379 = vweird.f32 %v373
    %vm380 = vweird.f32 %v374
    %vm381 = vmor %vm379, %vm380
    %v382 = vsel %vm381, %v374, %v378
    %v383 = vand.u32 2147483647, %v373
    %vm384 = vcmp.eq.f32.partialorder %v383, 8.507059e+37
    %v385 = vand.u32 %v373, 2147483648
    %v386 = vor.u32 1.1754944e-38, %v385
    %v387 = vsel %vm384, %v386, %v382
    %v388 = vmul.f32 1.0, %v387
    %v390 = vrot.slane %v368, 1
    %v392 = vadd.f32 %v390, %v346
    %v393 = vxor.u32 %v392, 2147483648
    %v394 = vmul.f32 %v393, 1.442695
    %v395 = vpow.pop %v394
    %v396 = vadd.f32 %v395, 1.0
    %v397 = vrcp.pop %v396
    %v398 = vmul.f32 %v396, %v397
    %v399 = vsub.f32 1.0, %v398
    %v400 = vmul.f32 %v397, %v399
    %v401 = vadd.f32 %v397, %v400
    %vm402 = vweird.f32 %v396
    %vm403 = vweird.f32 %v397
    %vm404 = vmor %vm402, %vm403
    %v405 = vsel %vm404, %v397, %v401
    %v406 = vand.u32 2147483647, %v396
    %vm407 = vcmp.eq.f32.partialorder %v406, 8.507059e+37
    %v408 = vand.u32 %v396, 2147483648
    %v409 = vor.u32 1.1754944e-38, %v408
    %v410 = vsel %vm407, %v409, %v405
    %v411 = vmul.f32 1.0, %v410
    %v412 = vmul.f32 %v388, %v366
    %v413 = vrot.slane %v368, 2
    %v415 = vadd.f32 %v413, %v412
    %v416 = vtanh.pop %v415
    %v417 = vsub.f32 1.0, %v411
    %v418 = vmul.f32 %v417, %v416
    %v419 = vmul.f32 %v411, %v251
    %v420 = vadd.f32 %v418, %v419
    %421 = vst [vmem:[#allocation13] sm:$0x1] %v420
    %v422 = vld [vmem:[#allocation5] sm:$0xff]
    %v423 = vld [vmem:[#allocation5 + $0x8] sm:$0xff]
    %v424 = vld [vmem:[#allocation5 + $0x10] sm:$0xff]
    %v425 = vld [vmem:[#allocation5 + $0x18] sm:$0xff]
    %v426 = vld [vmem:[#allocation5 + $0x20] sm:$0xff]
    %v427 = vld [vmem:[#allocation5 + $0x28] sm:$0xff]
    %v428 = vld [vmem:[#allocation5 + $0x30] sm:$0xff]
    %v429 = vld [vmem:[#allocation5 + $0x38] sm:$0xff]
    %v430 = vld [vmem:[#allocation5 + $0x40] sm:$0xff]
    %v431 = vld [vmem:[#allocation5 + $0x48] sm:$0xff]
    %v432 = vld [vmem:[#allocation5 + $0x50] sm:$0xff]
    %v433 = vld [vmem:[#allocation5 + $0x58] sm:$0xff]
    %v434 = vld [vmem:[#allocation5 + $0x60] sm:$0xff]
    %v435 = vld [vmem:[#allocation5 + $0x68] sm:$0xff]
    %v436 = vld [vmem:[#allocation5 + $0x70] sm:$0xff]
    %v437 = vld [vmem:[#allocation5 + $0x78] sm:$0xff]
    %v438 = vld [vmem:[#allocation5 + $0x80] sm:$0xff]
    %v439 = vld [vmem:[#allocation5 + $0x88] sm:$0xff]
    %v440 = vld [vmem:[#allocation5 + $0x90] sm:$0xff]
    %v441 = vld [vmem:[#allocation5 + $0x98] sm:$0xff]
    %v442 = vld [vmem:[#allocation5 + $0xa0] sm:$0xff]
    %v443 = vld [vmem:[#allocation5 + $0xa8] sm:$0xff]
    %v444 = vld [vmem:[#allocation5 + $0xb0] sm:$0xff]
    %v445 = vld [vmem:[#allocation5 + $0xb8] sm:$0xff]
    %v446 = vld [vmem:[#allocation5 + $0xc0] sm:$0xff]
    %v447 = vld [vmem:[#allocation5 + $0xc8] sm:$0xff]
    %v448 = vld [vmem:[#allocation5 + $0xd0] sm:$0xff]
    %v449 = vld [vmem:[#allocation5 + $0xd8] sm:$0xff]
    %v450 = vld [vmem:[#allocation5 + $0xe0] sm:$0xff]
    %v451 = vld [vmem:[#allocation5 + $0xe8] sm:$0xff]
    %v452 = vld [vmem:[#allocation5 + $0xf0] sm:$0xff]
    %v453 = vld [vmem:[#allocation5 + $0xf8] sm:$0xff]
    %v454 = vld [vmem:[#allocation5 + $0x100] sm:$0xff]
    %v455 = vld [vmem:[#allocation5 + $0x108] sm:$0xff]
    %v456 = vld [vmem:[#allocation5 + $0x110] sm:$0xff]
    %v457 = vld [vmem:[#allocation5 + $0x118] sm:$0xff]
    %v458 = vld [vmem:[#allocation5 + $0x120] sm:$0xff]
    %v459 = vld [vmem:[#allocation5 + $0x128] sm:$0xff]
    %v460 = vld [vmem:[#allocation5 + $0x130] sm:$0xff]
    %v461 = vld [vmem:[#allocation5 + $0x138] sm:$0xff]
    %v462 = vld [vmem:[#allocation5 + $0x140] sm:$0xff]
    %v463 = vld [vmem:[#allocation5 + $0x148] sm:$0xff]
    %v464 = vld [vmem:[#allocation5 + $0x150] sm:$0xff]
    %v465 = vld [vmem:[#allocation5 + $0x158] sm:$0xff]
    %v466 = vld [vmem:[#allocation5 + $0x160] sm:$0xff]
    %v467 = vld [vmem:[#allocation5 + $0x168] sm:$0xff]
    %v468 = vld [vmem:[#allocation5 + $0x170] sm:$0xff]
    %v469 = vld [vmem:[#allocation5 + $0x178] sm:$0xff]
    %v470 = vld [vmem:[%s6] sm:$0x7]
    %v472 = vperm.slane %v470, 0
    %v473 = vperm.slane %v470, 1
    %v474 = vperm.slane %v470, 2
    %478 = vmatpush.msra.mxu0 %v467
    %479 = vmatpush.msra.mxu0 %v464
    %480 = vmatpush.msra.mxu0 %v461
    %481 = vmatpush.msra.mxu0 %v458
    %482 = vmatpush.msra.mxu0 %v455
    %483 = vmatpush.msra.mxu0 %v452
    %484 = vmatpush.msra.mxu0 %v449
    %485 = vmatpush.msra.mxu0 %v446
    %486 = vmatpush.msra.mxu0 %v443
    %487 = vmatpush.msra.mxu0 %v440
    %488 = vmatpush.msra.mxu0 %v437
    %489 = vmatpush.msra.mxu0 %v434
    %490 = vmatpush.msra.mxu0 %v431
    %491 = vmatpush.msra.mxu0 %v428
    %492 = vmatpush.msra.mxu0 %v425
    %493 = vmatpush.msra.mxu0 %v422
    %494 = vmatmul.f32.gmra.mxu0 %v420
    %v495 = vpop.f32.mrf.mxu0
    %v496 = vadd.f32 %v472, %v495
    %497 = vdwg.mxu0
    %498 = vmatpush.msra.mxu0 %v468
    %499 = vmatpush.msra.mxu0 %v465
    %500 = vmatpush.msra.mxu0 %v462
    %501 = vmatpush.msra.mxu0 %v459
    %502 = vmatpush.msra.mxu0 %v456
    %503 = vmatpush.msra.mxu0 %v453
    %504 = vmatpush.msra.mxu0 %v450
    %505 = vmatpush.msra.mxu0 %v447
    %506 = vmatpush.msra.mxu0 %v444
    %507 = vmatpush.msra.mxu0 %v441
    %508 = vmatpush.msra.mxu0 %v438
    %509 = vmatpush.msra.mxu0 %v435
    %510 = vmatpush.msra.mxu0 %v432
    %511 = vmatpush.msra.mxu0 %v429
    %512 = vmatpush.msra.mxu0 %v426
    %513 = vmatpush.msra.mxu0 %v423
    %514 = vmatmul.f32.gmra.mxu0 %v420
    %v515 = vpop.f32.mrf.mxu0
    %v516 = vadd.f32 %v473, %v515
    %517 = vdwg.mxu0
    %518 = vmatpush.msra.mxu0 %v469
    %519 = vmatpush.msra.mxu0 %v466
    %520 = vmatpush.msra.mxu0 %v463
    %521 = vmatpush.msra.mxu0 %v460
    %522 = vmatpush.msra.mxu0 %v457
    %523 = vmatpush.msra.mxu0 %v454
    %524 = vmatpush.msra.mxu0 %v451
    %525 = vmatpush.msra.mxu0 %v448
    %526 = vmatpush.msra.mxu0 %v445
    %527 = vmatpush.msra.mxu0 %v442
    %528 = vmatpush.msra.mxu0 %v439
    %529 = vmatpush.msra.mxu0 %v436
    %530 = vmatpush.msra.mxu0 %v433
    %531 = vmatpush.msra.mxu0 %v430
    %532 = vmatpush.msra.mxu0 %v427
    %533 = vmatpush.msra.mxu0 %v424
    %534 = vmatmul.f32.gmra.mxu0 %v420
    %v535 = vpop.f32.mrf.mxu0
    %v536 = vadd.f32 %v474, %v535
    %537 = vdwg.mxu0
    %s538 = scalar_lea.vmem [#allocation4], 1
    %v539 = vld [vmem:[%s538] ss:$8 sm:$0x7]
    %v540 = vadd.f32 %v539, %v496
    %v541 = vxor.u32 %v540, 2147483648
    %v542 = vmul.f32 %v541, 1.442695
    %v543 = vpow.pop %v542
    %v544 = vadd.f32 %v543, 1.0
    %v545 = vrcp.pop %v544
    %v546 = vmul.f32 %v544, %v545
    %v547 = vsub.f32 1.0, %v546
    %v548 = vmul.f32 %v545, %v547
    %v549 = vadd.f32 %v545, %v548
    %vm550 = vweird.f32 %v544
    %vm551 = vweird.f32 %v545
    %vm552 = vmor %vm550, %vm551
    %v553 = vsel %vm552, %v545, %v549
    %v554 = vand.u32 2147483647, %v544
    %vm555 = vcmp.eq.f32.partialorder %v554, 8.507059e+37
    %v556 = vand.u32 %v544, 2147483648
    %v557 = vor.u32 1.1754944e-38, %v556
    %v558 = vsel %vm555, %v557, %v553
    %v559 = vmul.f32 1.0, %v558
    %v561 = vrot.slane %v539, 1
    %v563 = vadd.f32 %v561, %v516
    %v564 = vxor.u32 %v563, 2147483648
    %v565 = vmul.f32 %v564, 1.442695
    %v566 = vpow.pop %v565
    %v567 = vadd.f32 %v566, 1.0
    %v568 = vrcp.pop %v567
    %v569 = vmul.f32 %v567, %v568
    %v570 = vsub.f32 1.0, %v569
    %v571 = vmul.f32 %v568, %v570
    %v572 = vadd.f32 %v568, %v571
    %vm573 = vweird.f32 %v567
    %vm574 = vweird.f32 %v568
    %vm575 = vmor %vm573, %vm574
    %v576 = vsel %vm575, %v568, %v572
    %v577 = vand.u32 2147483647, %v567
    %vm578 = vcmp.eq.f32.partialorder %v577, 8.507059e+37
    %v579 = vand.u32 %v567, 2147483648
    %v580 = vor.u32 1.1754944e-38, %v579
    %v581 = vsel %vm578, %v580, %v576
    %v582 = vmul.f32 1.0, %v581
    %v583 = vmul.f32 %v559, %v536
    %v584 = vrot.slane %v539, 2
    %v586 = vadd.f32 %v584, %v583
    %v587 = vtanh.pop %v586
    %v588 = vsub.f32 1.0, %v582
    %v589 = vmul.f32 %v588, %v587
    %v590 = vmul.f32 %v582, %v420
    %v591 = vadd.f32 %v589, %v590
    %592 = vst [vmem:[#allocation13 + $0x1] sm:$0x1] %v591
    %v593 = vld [vmem:[#allocation5] sm:$0xff]
    %v594 = vld [vmem:[#allocation5 + $0x8] sm:$0xff]
    %v595 = vld [vmem:[#allocation5 + $0x10] sm:$0xff]
    %v596 = vld [vmem:[#allocation5 + $0x18] sm:$0xff]
    %v597 = vld [vmem:[#allocation5 + $0x20] sm:$0xff]
    %v598 = vld [vmem:[#allocation5 + $0x28] sm:$0xff]
    %v599 = vld [vmem:[#allocation5 + $0x30] sm:$0xff]
    %v600 = vld [vmem:[#allocation5 + $0x38] sm:$0xff]
    %v601 = vld [vmem:[#allocation5 + $0x40] sm:$0xff]
    %v602 = vld [vmem:[#allocation5 + $0x48] sm:$0xff]
    %v603 = vld [vmem:[#allocation5 + $0x50] sm:$0xff]
    %v604 = vld [vmem:[#allocation5 + $0x58] sm:$0xff]
    %v605 = vld [vmem:[#allocation5 + $0x60] sm:$0xff]
    %v606 = vld [vmem:[#allocation5 + $0x68] sm:$0xff]
    %v607 = vld [vmem:[#allocation5 + $0x70] sm:$0xff]
    %v608 = vld [vmem:[#allocation5 + $0x78] sm:$0xff]
    %v609 = vld [vmem:[#allocation5 + $0x80] sm:$0xff]
    %v610 = vld [vmem:[#allocation5 + $0x88] sm:$0xff]
    %v611 = vld [vmem:[#allocation5 + $0x90] sm:$0xff]
    %v612 = vld [vmem:[#allocation5 + $0x98] sm:$0xff]
    %v613 = vld [vmem:[#allocation5 + $0xa0] sm:$0xff]
    %v614 = vld [vmem:[#allocation5 + $0xa8] sm:$0xff]
    %v615 = vld [vmem:[#allocation5 + $0xb0] sm:$0xff]
    %v616 = vld [vmem:[#allocation5 + $0xb8] sm:$0xff]
    %v617 = vld [vmem:[#allocation5 + $0xc0] sm:$0xff]
    %v618 = vld [vmem:[#allocation5 + $0xc8] sm:$0xff]
    %v619 = vld [vmem:[#allocation5 + $0xd0] sm:$0xff]
    %v620 = vld [vmem:[#allocation5 + $0xd8] sm:$0xff]
    %v621 = vld [vmem:[#allocation5 + $0xe0] sm:$0xff]
    %v622 = vld [vmem:[#allocation5 + $0xe8] sm:$0xff]
    %v623 = vld [vmem:[#allocation5 + $0xf0] sm:$0xff]
    %v624 = vld [vmem:[#allocation5 + $0xf8] sm:$0xff]
    %v625 = vld [vmem:[#allocation5 + $0x100] sm:$0xff]
    %v626 = vld [vmem:[#allocation5 + $0x108] sm:$0xff]
    %v627 = vld [vmem:[#allocation5 + $0x110] sm:$0xff]
    %v628 = vld [vmem:[#allocation5 + $0x118] sm:$0xff]
    %v629 = vld [vmem:[#allocation5 + $0x120] sm:$0xff]
    %v630 = vld [vmem:[#allocation5 + $0x128] sm:$0xff]
    %v631 = vld [vmem:[#allocation5 + $0x130] sm:$0xff]
    %v632 = vld [vmem:[#allocation5 + $0x138] sm:$0xff]
    %v633 = vld [vmem:[#allocation5 + $0x140] sm:$0xff]
    %v634 = vld [vmem:[#allocation5 + $0x148] sm:$0xff]
    %v635 = vld [vmem:[#allocation5 + $0x150] sm:$0xff]
    %v636 = vld [vmem:[#allocation5 + $0x158] sm:$0xff]
    %v637 = vld [vmem:[#allocation5 + $0x160] sm:$0xff]
    %v638 = vld [vmem:[#allocation5 + $0x168] sm:$0xff]
    %v639 = vld [vmem:[#allocation5 + $0x170] sm:$0xff]
    %v640 = vld [vmem:[#allocation5 + $0x178] sm:$0xff]
    %v641 = vld [vmem:[%s6] sm:$0x7]
    %v643 = vperm.slane %v641, 0
    %v644 = vperm.slane %v641, 1
    %v645 = vperm.slane %v641, 2
    %649 = vmatpush.msra.mxu0 %v638
    %650 = vmatpush.msra.mxu0 %v635
    %651 = vmatpush.msra.mxu0 %v632
    %652 = vmatpush.msra.mxu0 %v629
    %653 = vmatpush.msra.mxu0 %v626
    %654 = vmatpush.msra.mxu0 %v623
    %655 = vmatpush.msra.mxu0 %v620
    %656 = vmatpush.msra.mxu0 %v617
    %657 = vmatpush.msra.mxu0 %v614
    %658 = vmatpush.msra.mxu0 %v611
    %659 = vmatpush.msra.mxu0 %v608
    %660 = vmatpush.msra.mxu0 %v605
    %661 = vmatpush.msra.mxu0 %v602
    %662 = vmatpush.msra.mxu0 %v599
    %663 = vmatpush.msra.mxu0 %v596
    %664 = vmatpush.msra.mxu0 %v593
    %665 = vmatmul.f32.gmra.mxu0 %v591
    %v666 = vpop.f32.mrf.mxu0
    %v667 = vadd.f32 %v643, %v666
    %668 = vdwg.mxu0
    %669 = vmatpush.msra.mxu0 %v639
    %670 = vmatpush.msra.mxu0 %v636
    %671 = vmatpush.msra.mxu0 %v633
    %672 = vmatpush.msra.mxu0 %v630
    %673 = vmatpush.msra.mxu0 %v627
    %674 = vmatpush.msra.mxu0 %v624
    %675 = vmatpush.msra.mxu0 %v621
    %676 = vmatpush.msra.mxu0 %v618
    %677 = vmatpush.msra.mxu0 %v615
    %678 = vmatpush.msra.mxu0 %v612
    %679 = vmatpush.msra.mxu0 %v609
    %680 = vmatpush.msra.mxu0 %v606
    %681 = vmatpush.msra.mxu0 %v603
    %682 = vmatpush.msra.mxu0 %v600
    %683 = vmatpush.msra.mxu0 %v597
    %684 = vmatpush.msra.mxu0 %v594
    %685 = vmatmul.f32.gmra.mxu0 %v591
    %v686 = vpop.f32.mrf.mxu0
    %v687 = vadd.f32 %v644, %v686
    %688 = vdwg.mxu0
    %689 = vmatpush.msra.mxu0 %v640
    %690 = vmatpush.msra.mxu0 %v637
    %691 = vmatpush.msra.mxu0 %v634
    %692 = vmatpush.msra.mxu0 %v631
    %693 = vmatpush.msra.mxu0 %v628
    %694 = vmatpush.msra.mxu0 %v625
    %695 = vmatpush.msra.mxu0 %v622
    %696 = vmatpush.msra.mxu0 %v619
    %697 = vmatpush.msra.mxu0 %v616
    %698 = vmatpush.msra.mxu0 %v613
    %699 = vmatpush.msra.mxu0 %v610
    %700 = vmatpush.msra.mxu0 %v607
    %701 = vmatpush.msra.mxu0 %v604
    %702 = vmatpush.msra.mxu0 %v601
    %703 = vmatpush.msra.mxu0 %v598
    %704 = vmatpush.msra.mxu0 %v595
    %705 = vmatmul.f32.gmra.mxu0 %v591
    %v706 = vpop.f32.mrf.mxu0
    %v707 = vadd.f32 %v645, %v706
    %708 = vdwg.mxu0
    %s709 = scalar_lea.vmem [#allocation4], 2
    %v710 = vld [vmem:[%s709] ss:$8 sm:$0x7]
    %v711 = vadd.f32 %v710, %v667
    %v712 = vxor.u32 %v711, 2147483648
    %v713 = vmul.f32 %v712, 1.442695
    %v714 = vpow.pop %v713
    %v715 = vadd.f32 %v714, 1.0
    %v716 = vrcp.pop %v715
    %v717 = vmul.f32 %v715, %v716
    %v718 = vsub.f32 1.0, %v717
    %v719 = vmul.f32 %v716, %v718
    %v720 = vadd.f32 %v716, %v719
    %vm721 = vweird.f32 %v715
    %vm722 = vweird.f32 %v716
    %vm723 = vmor %vm721, %vm722
    %v724 = vsel %vm723, %v716, %v720
    %v725 = vand.u32 2147483647, %v715
    %vm726 = vcmp.eq.f32.partialorder %v725, 8.507059e+37
    %v727 = vand.u32 %v715, 2147483648
    %v728 = vor.u32 1.1754944e-38, %v727
    %v729 = vsel %vm726, %v728, %v724
    %v730 = vmul.f32 1.0, %v729
    %v732 = vrot.slane %v710, 1
    %v734 = vadd.f32 %v732, %v687
    %v735 = vxor.u32 %v734, 2147483648
    %v736 = vmul.f32 %v735, 1.442695
    %v737 = vpow.pop %v736
    %v738 = vadd.f32 %v737, 1.0
    %v739 = vrcp.pop %v738
    %v740 = vmul.f32 %v738, %v739
    %v741 = vsub.f32 1.0, %v740
    %v742 = vmul.f32 %v739, %v741
    %v743 = vadd.f32 %v739, %v742
    %vm744 = vweird.f32 %v738
    %vm745 = vweird.f32 %v739
    %vm746 = vmor %vm744, %vm745
    %v747 = vsel %vm746, %v739, %v743
    %v748 = vand.u32 2147483647, %v738
    %vm749 = vcmp.eq.f32.partialorder %v748, 8.507059e+37
    %v750 = vand.u32 %v738, 2147483648
    %v751 = vor.u32 1.1754944e-38, %v750
    %v752 = vsel %vm749, %v751, %v747
    %v753 = vmul.f32 1.0, %v752
    %v754 = vmul.f32 %v730, %v707
    %v755 = vrot.slane %v710, 2
    %v757 = vadd.f32 %v755, %v754
    %v758 = vtanh.pop %v757
    %v759 = vsub.f32 1.0, %v753
    %v760 = vmul.f32 %v759, %v758
    %v761 = vmul.f32 %v753, %v591
    %v762 = vadd.f32 %v760, %v761
    %763 = vst [vmem:[#allocation13 + $0x2] sm:$0x1] %v762
    %v764 = vld [vmem:[#allocation5] sm:$0xff]
    %v765 = vld [vmem:[#allocation5 + $0x8] sm:$0xff]
    %v766 = vld [vmem:[#allocation5 + $0x10] sm:$0xff]
    %v767 = vld [vmem:[#allocation5 + $0x18] sm:$0xff]
    %v768 = vld [vmem:[#allocation5 + $0x20] sm:$0xff]
    %v769 = vld [vmem:[#allocation5 + $0x28] sm:$0xff]
    %v770 = vld [vmem:[#allocation5 + $0x30] sm:$0xff]
    %v771 = vld [vmem:[#allocation5 + $0x38] sm:$0xff]
    %v772 = vld [vmem:[#allocation5 + $0x40] sm:$0xff]
    %v773 = vld [vmem:[#allocation5 + $0x48] sm:$0xff]
    %v774 = vld [vmem:[#allocation5 + $0x50] sm:$0xff]
    %v775 = vld [vmem:[#allocation5 + $0x58] sm:$0xff]
    %v776 = vld [vmem:[#allocation5 + $0x60] sm:$0xff]
    %v777 = vld [vmem:[#allocation5 + $0x68] sm:$0xff]
    %v778 = vld [vmem:[#allocation5 + $0x70] sm:$0xff]
    %v779 = vld [vmem:[#allocation5 + $0x78] sm:$0xff]
    %v780 = vld [vmem:[#allocation5 + $0x80] sm:$0xff]
    %v781 = vld [vmem:[#allocation5 + $0x88] sm:$0xff]
    %v782 = vld [vmem:[#allocation5 + $0x90] sm:$0xff]
    %v783 = vld [vmem:[#allocation5 + $0x98] sm:$0xff]
    %v784 = vld [vmem:[#allocation5 + $0xa0] sm:$0xff]
    %v785 = vld [vmem:[#allocation5 + $0xa8] sm:$0xff]
    %v786 = vld [vmem:[#allocation5 + $0xb0] sm:$0xff]
    %v787 = vld [vmem:[#allocation5 + $0xb8] sm:$0xff]
    %v788 = vld [vmem:[#allocation5 + $0xc0] sm:$0xff]
    %v789 = vld [vmem:[#allocation5 + $0xc8] sm:$0xff]
    %v790 = vld [vmem:[#allocation5 + $0xd0] sm:$0xff]
    %v791 = vld [vmem:[#allocation5 + $0xd8] sm:$0xff]
    %v792 = vld [vmem:[#allocation5 + $0xe0] sm:$0xff]
    %v793 = vld [vmem:[#allocation5 + $0xe8] sm:$0xff]
    %v794 = vld [vmem:[#allocation5 + $0xf0] sm:$0xff]
    %v795 = vld [vmem:[#allocation5 + $0xf8] sm:$0xff]
    %v796 = vld [vmem:[#allocation5 + $0x100] sm:$0xff]
    %v797 = vld [vmem:[#allocation5 + $0x108] sm:$0xff]
    %v798 = vld [vmem:[#allocation5 + $0x110] sm:$0xff]
    %v799 = vld [vmem:[#allocation5 + $0x118] sm:$0xff]
    %v800 = vld [vmem:[#allocation5 + $0x120] sm:$0xff]
    %v801 = vld [vmem:[#allocation5 + $0x128] sm:$0xff]
    %v802 = vld [vmem:[#allocation5 + $0x130] sm:$0xff]
    %v803 = vld [vmem:[#allocation5 + $0x138] sm:$0xff]
    %v804 = vld [vmem:[#allocation5 + $0x140] sm:$0xff]
    %v805 = vld [vmem:[#allocation5 + $0x148] sm:$0xff]
    %v806 = vld [vmem:[#allocation5 + $0x150] sm:$0xff]
    %v807 = vld [vmem:[#allocation5 + $0x158] sm:$0xff]
    %v808 = vld [vmem:[#allocation5 + $0x160] sm:$0xff]
    %v809 = vld [vmem:[#allocation5 + $0x168] sm:$0xff]
    %v810 = vld [vmem:[#allocation5 + $0x170] sm:$0xff]
    %v811 = vld [vmem:[#allocation5 + $0x178] sm:$0xff]
    %v812 = vld [vmem:[%s6] sm:$0x7]
    %v814 = vperm.slane %v812, 0
    %v815 = vperm.slane %v812, 1
    %v816 = vperm.slane %v812, 2
    %820 = vmatpush.msra.mxu0 %v809
    %821 = vmatpush.msra.mxu0 %v806
    %822 = vmatpush.msra.mxu0 %v803
    %823 = vmatpush.msra.mxu0 %v800
    %824 = vmatpush.msra.mxu0 %v797
    %825 = vmatpush.msra.mxu0 %v794
    %826 = vmatpush.msra.mxu0 %v791
    %827 = vmatpush.msra.mxu0 %v788
    %828 = vmatpush.msra.mxu0 %v785
    %829 = vmatpush.msra.mxu0 %v782
    %830 = vmatpush.msra.mxu0 %v779
    %831 = vmatpush.msra.mxu0 %v776
    %832 = vmatpush.msra.mxu0 %v773
    %833 = vmatpush.msra.mxu0 %v770
    %834 = vmatpush.msra.mxu0 %v767
    %835 = vmatpush.msra.mxu0 %v764
    %836 = vmatmul.f32.gmra.mxu0 %v762
    %v837 = vpop.f32.mrf.mxu0
    %v838 = vadd.f32 %v814, %v837
    %839 = vdwg.mxu0
    %840 = vmatpush.msra.mxu0 %v810
    %841 = vmatpush.msra.mxu0 %v807
    %842 = vmatpush.msra.mxu0 %v804
    %843 = vmatpush.msra.mxu0 %v801
    %844 = vmatpush.msra.mxu0 %v798
    %845 = vmatpush.msra.mxu0 %v795
    %846 = vmatpush.msra.mxu0 %v792
    %847 = vmatpush.msra.mxu0 %v789
    %848 = vmatpush.msra.mxu0 %v786
    %849 = vmatpush.msra.mxu0 %v783
    %850 = vmatpush.msra.mxu0 %v780
    %851 = vmatpush.msra.mxu0 %v777
    %852 = vmatpush.msra.mxu0 %v774
    %853 = vmatpush.msra.mxu0 %v771
    %854 = vmatpush.msra.mxu0 %v768
    %855 = vmatpush.msra.mxu0 %v765
    %856 = vmatmul.f32.gmra.mxu0 %v762
    %v857 = vpop.f32.mrf.mxu0
    %v858 = vadd.f32 %v815, %v857
    %859 = vdwg.mxu0
    %860 = vmatpush.msra.mxu0 %v811
    %861 = vmatpush.msra.mxu0 %v808
    %862 = vmatpush.msra.mxu0 %v805
    %863 = vmatpush.msra.mxu0 %v802
    %864 = vmatpush.msra.mxu0 %v799
    %865 = vmatpush.msra.mxu0 %v796
    %866 = vmatpush.msra.mxu0 %v793
    %867 = vmatpush.msra.mxu0 %v790
    %868 = vmatpush.msra.mxu0 %v787
    %869 = vmatpush.msra.mxu0 %v784
    %870 = vmatpush.msra.mxu0 %v781
    %871 = vmatpush.msra.mxu0 %v778
    %872 = vmatpush.msra.mxu0 %v775
    %873 = vmatpush.msra.mxu0 %v772
    %874 = vmatpush.msra.mxu0 %v769
    %875 = vmatpush.msra.mxu0 %v766
    %876 = vmatmul.f32.gmra.mxu0 %v762
    %v877 = vpop.f32.mrf.mxu0
    %v878 = vadd.f32 %v816, %v877
    %879 = vdwg.mxu0
    %s880 = scalar_lea.vmem [#allocation4], 3
    %v881 = vld [vmem:[%s880] ss:$8 sm:$0x7]
    %v882 = vadd.f32 %v881, %v838
    %v883 = vxor.u32 %v882, 2147483648
    %v884 = vmul.f32 %v883, 1.442695
    %v885 = vpow.pop %v884
    %v886 = vadd.f32 %v885, 1.0
    %v887 = vrcp.pop %v886
    %v888 = vmul.f32 %v886, %v887
    %v889 = vsub.f32 1.0, %v888
    %v890 = vmul.f32 %v887, %v889
    %v891 = vadd.f32 %v887, %v890
    %vm892 = vweird.f32 %v886
    %vm893 = vweird.f32 %v887
    %vm894 = vmor %vm892, %vm893
    %v895 = vsel %vm894, %v887, %v891
    %v896 = vand.u32 2147483647, %v886
    %vm897 = vcmp.eq.f32.partialorder %v896, 8.507059e+37
    %v898 = vand.u32 %v886, 2147483648
    %v899 = vor.u32 1.1754944e-38, %v898
    %v900 = vsel %vm897, %v899, %v895
    %v901 = vmul.f32 1.0, %v900
    %v903 = vrot.slane %v881, 1
    %v905 = vadd.f32 %v903, %v858
    %v906 = vxor.u32 %v905, 2147483648
    %v907 = vmul.f32 %v906, 1.442695
    %v908 = vpow.pop %v907
    %v909 = vadd.f32 %v908, 1.0
    %v910 = vrcp.pop %v909
    %v911 = vmul.f32 %v909, %v910
    %v912 = vsub.f32 1.0, %v911
    %v913 = vmul.f32 %v910, %v912
    %v914 = vadd.f32 %v910, %v913
    %vm915 = vweird.f32 %v909
    %vm916 = vweird.f32 %v910
    %vm917 = vmor %vm915, %vm916
    %v918 = vsel %vm917, %v910, %v914
    %v919 = vand.u32 2147483647, %v909
    %vm920 = vcmp.eq.f32.partialorder %v919, 8.507059e+37
    %v921 = vand.u32 %v909, 2147483648
    %v922 = vor.u32 1.1754944e-38, %v921
    %v923 = vsel %vm920, %v922, %v918
    %v924 = vmul.f32 1.0, %v923
    %v925 = vmul.f32 %v901, %v878
    %v926 = vrot.slane %v881, 2
    %v928 = vadd.f32 %v926, %v925
    %v929 = vtanh.pop %v928
    %v930 = vsub.f32 1.0, %v924
    %v931 = vmul.f32 %v930, %v929
    %v932 = vmul.f32 %v924, %v762
    %v933 = vadd.f32 %v931, %v932
    %934 = vst [vmem:[#allocation13 + $0x3] sm:$0x1] %v933
    %v935 = vld [vmem:[#allocation5] sm:$0xff]
    %v936 = vld [vmem:[#allocation5 + $0x8] sm:$0xff]
    %v937 = vld [vmem:[#allocation5 + $0x10] sm:$0xff]
    %v938 = vld [vmem:[#allocation5 + $0x18] sm:$0xff]
    %v939 = vld [vmem:[#allocation5 + $0x20] sm:$0xff]
    %v940 = vld [vmem:[#allocation5 + $0x28] sm:$0xff]
    %v941 = vld [vmem:[#allocation5 + $0x30] sm:$0xff]
    %v942 = vld [vmem:[#allocation5 + $0x38] sm:$0xff]
    %v943 = vld [vmem:[#allocation5 + $0x40] sm:$0xff]
    %v944 = vld [vmem:[#allocation5 + $0x48] sm:$0xff]
    %v945 = vld [vmem:[#allocation5 + $0x50] sm:$0xff]
    %v946 = vld [vmem:[#allocation5 + $0x58] sm:$0xff]
    %v947 = vld [vmem:[#allocation5 + $0x60] sm:$0xff]
    %v948 = vld [vmem:[#allocation5 + $0x68] sm:$0xff]
    %v949 = vld [vmem:[#allocation5 + $0x70] sm:$0xff]
    %v950 = vld [vmem:[#allocation5 + $0x78] sm:$0xff]
    %v951 = vld [vmem:[#allocation5 + $0x80] sm:$0xff]
    %v952 = vld [vmem:[#allocation5 + $0x88] sm:$0xff]
    %v953 = vld [vmem:[#allocation5 + $0x90] sm:$0xff]
    %v954 = vld [vmem:[#allocation5 + $0x98] sm:$0xff]
    %v955 = vld [vmem:[#allocation5 + $0xa0] sm:$0xff]
    %v956 = vld [vmem:[#allocation5 + $0xa8] sm:$0xff]
    %v957 = vld [vmem:[#allocation5 + $0xb0] sm:$0xff]
    %v958 = vld [vmem:[#allocation5 + $0xb8] sm:$0xff]
    %v959 = vld [vmem:[#allocation5 + $0xc0] sm:$0xff]
    %v960 = vld [vmem:[#allocation5 + $0xc8] sm:$0xff]
    %v961 = vld [vmem:[#allocation5 + $0xd0] sm:$0xff]
    %v962 = vld [vmem:[#allocation5 + $0xd8] sm:$0xff]
    %v963 = vld [vmem:[#allocation5 + $0xe0] sm:$0xff]
    %v964 = vld [vmem:[#allocation5 + $0xe8] sm:$0xff]
    %v965 = vld [vmem:[#allocation5 + $0xf0] sm:$0xff]
    %v966 = vld [vmem:[#allocation5 + $0xf8] sm:$0xff]
    %v967 = vld [vmem:[#allocation5 + $0x100] sm:$0xff]
    %v968 = vld [vmem:[#allocation5 + $0x108] sm:$0xff]
    %v969 = vld [vmem:[#allocation5 + $0x110] sm:$0xff]
    %v970 = vld [vmem:[#allocation5 + $0x118] sm:$0xff]
    %v971 = vld [vmem:[#allocation5 + $0x120] sm:$0xff]
    %v972 = vld [vmem:[#allocation5 + $0x128] sm:$0xff]
    %v973 = vld [vmem:[#allocation5 + $0x130] sm:$0xff]
    %v974 = vld [vmem:[#allocation5 + $0x138] sm:$0xff]
    %v975 = vld [vmem:[#allocation5 + $0x140] sm:$0xff]
    %v976 = vld [vmem:[#allocation5 + $0x148] sm:$0xff]
    %v977 = vld [vmem:[#allocation5 + $0x150] sm:$0xff]
    %v978 = vld [vmem:[#allocation5 + $0x158] sm:$0xff]
    %v979 = vld [vmem:[#allocation5 + $0x160] sm:$0xff]
    %v980 = vld [vmem:[#allocation5 + $0x168] sm:$0xff]
    %v981 = vld [vmem:[#allocation5 + $0x170] sm:$0xff]
    %v982 = vld [vmem:[#allocation5 + $0x178] sm:$0xff]
    %v983 = vld [vmem:[%s6] sm:$0x7]
    %v985 = vperm.slane %v983, 0
    %v986 = vperm.slane %v983, 1
    %v987 = vperm.slane %v983, 2
    %991 = vmatpush.msra.mxu0 %v980
    %992 = vmatpush.msra.mxu0 %v977
    %993 = vmatpush.msra.mxu0 %v974
    %994 = vmatpush.msra.mxu0 %v971
    %995 = vmatpush.msra.mxu0 %v968
    %996 = vmatpush.msra.mxu0 %v965
    %997 = vmatpush.msra.mxu0 %v962
    %998 = vmatpush.msra.mxu0 %v959
    %999 = vmatpush.msra.mxu0 %v956
    %1000 = vmatpush.msra.mxu0 %v953
    %1001 = vmatpush.msra.mxu0 %v950
    %1002 = vmatpush.msra.mxu0 %v947
    %1003 = vmatpush.msra.mxu0 %v944
    %1004 = vmatpush.msra.mxu0 %v941
    %1005 = vmatpush.msra.mxu0 %v938
    %1006 = vmatpush.msra.mxu0 %v935
    %1007 = vmatmul.f32.gmra.mxu0 %v933
    %v1008 = vpop.f32.mrf.mxu0
    %v1009 = vadd.f32 %v985, %v1008
    %1010 = vdwg.mxu0
    %1011 = vmatpush.msra.mxu0 %v981
    %1012 = vmatpush.msra.mxu0 %v978
    %1013 = vmatpush.msra.mxu0 %v975
    %1014 = vmatpush.msra.mxu0 %v972
    %1015 = vmatpush.msra.mxu0 %v969
    %1016 = vmatpush.msra.mxu0 %v966
    %1017 = vmatpush.msra.mxu0 %v963
    %1018 = vmatpush.msra.mxu0 %v960
    %1019 = vmatpush.msra.mxu0 %v957
    %1020 = vmatpush.msra.mxu0 %v954
    %1021 = vmatpush.msra.mxu0 %v951
    %1022 = vmatpush.msra.mxu0 %v948
    %1023 = vmatpush.msra.mxu0 %v945
    %1024 = vmatpush.msra.mxu0 %v942
    %1025 = vmatpush.msra.mxu0 %v939
    %1026 = vmatpush.msra.mxu0 %v936
    %1027 = vmatmul.f32.gmra.mxu0 %v933
    %v1028 = vpop.f32.mrf.mxu0
    %v1029 = vadd.f32 %v986, %v1028
    %1030 = vdwg.mxu0
    %1031 = vmatpush.msra.mxu0 %v982
    %1032 = vmatpush.msra.mxu0 %v979
    %1033 = vmatpush.msra.mxu0 %v976
    %1034 = vmatpush.msra.mxu0 %v973
    %1035 = vmatpush.msra.mxu0 %v970
    %1036 = vmatpush.msra.mxu0 %v967
    %1037 = vmatpush.msra.mxu0 %v964
    %1038 = vmatpush.msra.mxu0 %v961
    %1039 = vmatpush.msra.mxu0 %v958
    %1040 = vmatpush.msra.mxu0 %v955
    %1041 = vmatpush.msra.mxu0 %v952
    %1042 = vmatpush.msra.mxu0 %v949
    %1043 = vmatpush.msra.mxu0 %v946
    %1044 = vmatpush.msra.mxu0 %v943
    %1045 = vmatpush.msra.mxu0 %v940
    %1046 = vmatpush.msra.mxu0 %v937
    %1047 = vmatmul.f32.gmra.mxu0 %v933
    %v1048 = vpop.f32.mrf.mxu0
    %v1049 = vadd.f32 %v987, %v1048
    %1050 = vdwg.mxu0
    %s1051 = scalar_lea.vmem [#allocation4], 4
    %v1052 = vld [vmem:[%s1051] ss:$8 sm:$0x7]
    %v1053 = vadd.f32 %v1052, %v1009
    %v1054 = vxor.u32 %v1053, 2147483648
    %v1055 = vmul.f32 %v1054, 1.442695
    %v1056 = vpow.pop %v1055
    %v1057 = vadd.f32 %v1056, 1.0
    %v1058 = vrcp.pop %v1057
    %v1059 = vmul.f32 %v1057, %v1058
    %v1060 = vsub.f32 1.0, %v1059
    %v1061 = vmul.f32 %v1058, %v1060
    %v1062 = vadd.f32 %v1058, %v1061
    %vm1063 = vweird.f32 %v1057
    %vm1064 = vweird.f32 %v1058
    %vm1065 = vmor %vm1063, %vm1064
    %v1066 = vsel %vm1065, %v1058, %v1062
    %v1067 = vand.u32 2147483647, %v1057
    %vm1068 = vcmp.eq.f32.partialorder %v1067, 8.507059e+37
    %v1069 = vand.u32 %v1057, 2147483648
    %v1070 = vor.u32 1.1754944e-38, %v1069
    %v1071 = vsel %vm1068, %v1070, %v1066
    %v1072 = vmul.f32 1.0, %v1071
    %v1074 = vrot.slane %v1052, 1
    %v1076 = vadd.f32 %v1074, %v1029
    %v1077 = vxor.u32 %v1076, 2147483648
    %v1078 = vmul.f32 %v1077, 1.442695
    %v1079 = vpow.pop %v1078
    %v1080 = vadd.f32 %v1079, 1.0
    %v1081 = vrcp.pop %v1080
    %v1082 = vmul.f32 %v1080, %v1081
    %v1083 = vsub.f32 1.0, %v1082
    %v1084 = vmul.f32 %v1081, %v1083
    %v1085 = vadd.f32 %v1081, %v1084
    %vm1086 = vweird.f32 %v1080
    %vm1087 = vweird.f32 %v1081
    %vm1088 = vmor %vm1086, %vm1087
    %v1089 = vsel %vm1088, %v1081, %v1085
    %v1090 = vand.u32 2147483647, %v1080
    %vm1091 = vcmp.eq.f32.partialorder %v1090, 8.507059e+37
    %v1092 = vand.u32 %v1080, 2147483648
    %v1093 = vor.u32 1.1754944e-38, %v1092
    %v1094 = vsel %vm1091, %v1093, %v1089
    %v1095 = vmul.f32 1.0, %v1094
    %v1096 = vmul.f32 %v1072, %v1049
    %v1097 = vrot.slane %v1052, 2
    %v1099 = vadd.f32 %v1097, %v1096
    %v1100 = vtanh.pop %v1099
    %v1101 = vsub.f32 1.0, %v1095
    %v1102 = vmul.f32 %v1101, %v1100
    %v1103 = vmul.f32 %v1095, %v933
    %v1104 = vadd.f32 %v1102, %v1103
    %1105 = vst [vmem:[#allocation13 + $0x4] sm:$0x1] %v1104
    %v1106 = vld [vmem:[#allocation5] sm:$0xff]
    %v1107 = vld [vmem:[#allocation5 + $0x8] sm:$0xff]
    %v1108 = vld [vmem:[#allocation5 + $0x10] sm:$0xff]
    %v1109 = vld [vmem:[#allocation5 + $0x18] sm:$0xff]
    %v1110 = vld [vmem:[#allocation5 + $0x20] sm:$0xff]
    %v1111 = vld [vmem:[#allocation5 + $0x28] sm:$0xff]
    %v1112 = vld [vmem:[#allocation5 + $0x30] sm:$0xff]
    %v1113 = vld [vmem:[#allocation5 + $0x38] sm:$0xff]
    %v1114 = vld [vmem:[#allocation5 + $0x40] sm:$0xff]
    %v1115 = vld [vmem:[#allocation5 + $0x48] sm:$0xff]
    %v1116 = vld [vmem:[#allocation5 + $0x50] sm:$0xff]
    %v1117 = vld [vmem:[#allocation5 + $0x58] sm:$0xff]
    %v1118 = vld [vmem:[#allocation5 + $0x60] sm:$0xff]
    %v1119 = vld [vmem:[#allocation5 + $0x68] sm:$0xff]
    %v1120 = vld [vmem:[#allocation5 + $0x70] sm:$0xff]
    %v1121 = vld [vmem:[#allocation5 + $0x78] sm:$0xff]
    %v1122 = vld [vmem:[#allocation5 + $0x80] sm:$0xff]
    %v1123 = vld [vmem:[#allocation5 + $0x88] sm:$0xff]
    %v1124 = vld [vmem:[#allocation5 + $0x90] sm:$0xff]
    %v1125 = vld [vmem:[#allocation5 + $0x98] sm:$0xff]
    %v1126 = vld [vmem:[#allocation5 + $0xa0] sm:$0xff]
    %v1127 = vld [vmem:[#allocation5 + $0xa8] sm:$0xff]
    %v1128 = vld [vmem:[#allocation5 + $0xb0] sm:$0xff]
    %v1129 = vld [vmem:[#allocation5 + $0xb8] sm:$0xff]
    %v1130 = vld [vmem:[#allocation5 + $0xc0] sm:$0xff]
    %v1131 = vld [vmem:[#allocation5 + $0xc8] sm:$0xff]
    %v1132 = vld [vmem:[#allocation5 + $0xd0] sm:$0xff]
    %v1133 = vld [vmem:[#allocation5 + $0xd8] sm:$0xff]
    %v1134 = vld [vmem:[#allocation5 + $0xe0] sm:$0xff]
    %v1135 = vld [vmem:[#allocation5 + $0xe8] sm:$0xff]
    %v1136 = vld [vmem:[#allocation5 + $0xf0] sm:$0xff]
    %v1137 = vld [vmem:[#allocation5 + $0xf8] sm:$0xff]
    %v1138 = vld [vmem:[#allocation5 + $0x100] sm:$0xff]
    %v1139 = vld [vmem:[#allocation5 + $0x108] sm:$0xff]
    %v1140 = vld [vmem:[#allocation5 + $0x110] sm:$0xff]
    %v1141 = vld [vmem:[#allocation5 + $0x118] sm:$0xff]
    %v1142 = vld [vmem:[#allocation5 + $0x120] sm:$0xff]
    %v1143 = vld [vmem:[#allocation5 + $0x128] sm:$0xff]
    %v1144 = vld [vmem:[#allocation5 + $0x130] sm:$0xff]
    %v1145 = vld [vmem:[#allocation5 + $0x138] sm:$0xff]
    %v1146 = vld [vmem:[#allocation5 + $0x140] sm:$0xff]
    %v1147 = vld [vmem:[#allocation5 + $0x148] sm:$0xff]
    %v1148 = vld [vmem:[#allocation5 + $0x150] sm:$0xff]
    %v1149 = vld [vmem:[#allocation5 + $0x158] sm:$0xff]
    %v1150 = vld [vmem:[#allocation5 + $0x160] sm:$0xff]
    %v1151 = vld [vmem:[#allocation5 + $0x168] sm:$0xff]
    %v1152 = vld [vmem:[#allocation5 + $0x170] sm:$0xff]
    %v1153 = vld [vmem:[#allocation5 + $0x178] sm:$0xff]
    %v1154 = vld [vmem:[%s6] sm:$0x7]
    %v1156 = vperm.slane %v1154, 0
    %v1157 = vperm.slane %v1154, 1
    %v1158 = vperm.slane %v1154, 2
    %1162 = vmatpush.msra.mxu0 %v1151
    %1163 = vmatpush.msra.mxu0 %v1148
    %1164 = vmatpush.msra.mxu0 %v1145
    %1165 = vmatpush.msra.mxu0 %v1142
    %1166 = vmatpush.msra.mxu0 %v1139
    %1167 = vmatpush.msra.mxu0 %v1136
    %1168 = vmatpush.msra.mxu0 %v1133
    %1169 = vmatpush.msra.mxu0 %v1130
    %1170 = vmatpush.msra.mxu0 %v1127
    %1171 = vmatpush.msra.mxu0 %v1124
    %1172 = vmatpush.msra.mxu0 %v1121
    %1173 = vmatpush.msra.mxu0 %v1118
    %1174 = vmatpush.msra.mxu0 %v1115
    %1175 = vmatpush.msra.mxu0 %v1112
    %1176 = vmatpush.msra.mxu0 %v1109
    %1177 = vmatpush.msra.mxu0 %v1106
    %1178 = vmatmul.f32.gmra.mxu0 %v1104
    %v1179 = vpop.f32.mrf.mxu0
    %v1180 = vadd.f32 %v1156, %v1179
    %1181 = vdwg.mxu0
    %1182 = vmatpush.msra.mxu0 %v1152
    %1183 = vmatpush.msra.mxu0 %v1149
    %1184 = vmatpush.msra.mxu0 %v1146
    %1185 = vmatpush.msra.mxu0 %v1143
    %1186 = vmatpush.msra.mxu0 %v1140
    %1187 = vmatpush.msra.mxu0 %v1137
    %1188 = vmatpush.msra.mxu0 %v1134
    %1189 = vmatpush.msra.mxu0 %v1131
    %1190 = vmatpush.msra.mxu0 %v1128
    %1191 = vmatpush.msra.mxu0 %v1125
    %1192 = vmatpush.msra.mxu0 %v1122
    %1193 = vmatpush.msra.mxu0 %v1119
    %1194 = vmatpush.msra.mxu0 %v1116
    %1195 = vmatpush.msra.mxu0 %v1113
    %1196 = vmatpush.msra.mxu0 %v1110
    %1197 = vmatpush.msra.mxu0 %v1107
    %1198 = vmatmul.f32.gmra.mxu0 %v1104
    %v1199 = vpop.f32.mrf.mxu0
    %v1200 = vadd.f32 %v1157, %v1199
    %1201 = vdwg.mxu0
    %1202 = vmatpush.msra.mxu0 %v1153
    %1203 = vmatpush.msra.mxu0 %v1150
    %1204 = vmatpush.msra.mxu0 %v1147
    %1205 = vmatpush.msra.mxu0 %v1144
    %1206 = vmatpush.msra.mxu0 %v1141
    %1207 = vmatpush.msra.mxu0 %v1138
    %1208 = vmatpush.msra.mxu0 %v1135
    %1209 = vmatpush.msra.mxu0 %v1132
    %1210 = vmatpush.msra.mxu0 %v1129
    %1211 = vmatpush.msra.mxu0 %v1126
    %1212 = vmatpush.msra.mxu0 %v1123
    %1213 = vmatpush.msra.mxu0 %v1120
    %1214 = vmatpush.msra.mxu0 %v1117
    %1215 = vmatpush.msra.mxu0 %v1114
    %1216 = vmatpush.msra.mxu0 %v1111
    %1217 = vmatpush.msra.mxu0 %v1108
    %1218 = vmatmul.f32.gmra.mxu0 %v1104
    %v1219 = vpop.f32.mrf.mxu0
    %v1220 = vadd.f32 %v1158, %v1219
    %1221 = vdwg.mxu0
    %s1222 = scalar_lea.vmem [#allocation4], 5
    %v1223 = vld [vmem:[%s1222] ss:$8 sm:$0x7]
    %v1224 = vadd.f32 %v1223, %v1180
    %v1225 = vxor.u32 %v1224, 2147483648
    %v1226 = vmul.f32 %v1225, 1.442695
    %v1227 = vpow.pop %v1226
    %v1228 = vadd.f32 %v1227, 1.0
    %v1229 = vrcp.pop %v1228
    %v1230 = vmul.f32 %v1228, %v1229
    %v1231 = vsub.f32 1.0, %v1230
    %v1232 = vmul.f32 %v1229, %v1231
    %v1233 = vadd.f32 %v1229, %v1232
    %vm1234 = vweird.f32 %v1228
    %vm1235 = vweird.f32 %v1229
    %vm1236 = vmor %vm1234, %vm1235
    %v1237 = vsel %vm1236, %v1229, %v1233
    %v1238 = vand.u32 2147483647, %v1228
    %vm1239 = vcmp.eq.f32.partialorder %v1238, 8.507059e+37
    %v1240 = vand.u32 %v1228, 2147483648
    %v1241 = vor.u32 1.1754944e-38, %v1240
    %v1242 = vsel %vm1239, %v1241, %v1237
    %v1243 = vmul.f32 1.0, %v1242
    %v1245 = vrot.slane %v1223, 1
    %v1247 = vadd.f32 %v1245, %v1200
    %v1248 = vxor.u32 %v1247, 2147483648
    %v1249 = vmul.f32 %v1248, 1.442695
    %v1250 = vpow.pop %v1249
    %v1251 = vadd.f32 %v1250, 1.0
    %v1252 = vrcp.pop %v1251
    %v1253 = vmul.f32 %v1251, %v1252
    %v1254 = vsub.f32 1.0, %v1253
    %v1255 = vmul.f32 %v1252, %v1254
    %v1256 = vadd.f32 %v1252, %v1255
    %vm1257 = vweird.f32 %v1251
    %vm1258 = vweird.f32 %v1252
    %vm1259 = vmor %vm1257, %vm1258
    %v1260 = vsel %vm1259, %v1252, %v1256
    %v1261 = vand.u32 2147483647, %v1251
    %vm1262 = vcmp.eq.f32.partialorder %v1261, 8.507059e+37
    %v1263 = vand.u32 %v1251, 2147483648
    %v1264 = vor.u32 1.1754944e-38, %v1263
    %v1265 = vsel %vm1262, %v1264, %v1260
    %v1266 = vmul.f32 1.0, %v1265
    %v1267 = vmul.f32 %v1243, %v1220
    %v1268 = vrot.slane %v1223, 2
    %v1270 = vadd.f32 %v1268, %v1267
    %v1271 = vtanh.pop %v1270
    %v1272 = vsub.f32 1.0, %v1266
    %v1273 = vmul.f32 %v1272, %v1271
    %v1274 = vmul.f32 %v1266, %v1104
    %v1275 = vadd.f32 %v1273, %v1274
    %1276 = vst [vmem:[#allocation13 + $0x5] sm:$0x1] %v1275
    %v1277 = vld [vmem:[#allocation5] sm:$0xff]
    %v1278 = vld [vmem:[#allocation5 + $0x8] sm:$0xff]
    %v1279 = vld [vmem:[#allocation5 + $0x10] sm:$0xff]
    %v1280 = vld [vmem:[#allocation5 + $0x18] sm:$0xff]
    %v1281 = vld [vmem:[#allocation5 + $0x20] sm:$0xff]
    %v1282 = vld [vmem:[#allocation5 + $0x28] sm:$0xff]
    %v1283 = vld [vmem:[#allocation5 + $0x30] sm:$0xff]
    %v1284 = vld [vmem:[#allocation5 + $0x38] sm:$0xff]
    %v1285 = vld [vmem:[#allocation5 + $0x40] sm:$0xff]
    %v1286 = vld [vmem:[#allocation5 + $0x48] sm:$0xff]
    %v1287 = vld [vmem:[#allocation5 + $0x50] sm:$0xff]
    %v1288 = vld [vmem:[#allocation5 + $0x58] sm:$0xff]
    %v1289 = vld [vmem:[#allocation5 + $0x60] sm:$0xff]
    %v1290 = vld [vmem:[#allocation5 + $0x68] sm:$0xff]
    %v1291 = vld [vmem:[#allocation5 + $0x70] sm:$0xff]
    %v1292 = vld [vmem:[#allocation5 + $0x78] sm:$0xff]
    %v1293 = vld [vmem:[#allocation5 + $0x80] sm:$0xff]
    %v1294 = vld [vmem:[#allocation5 + $0x88] sm:$0xff]
    %v1295 = vld [vmem:[#allocation5 + $0x90] sm:$0xff]
    %v1296 = vld [vmem:[#allocation5 + $0x98] sm:$0xff]
    %v1297 = vld [vmem:[#allocation5 + $0xa0] sm:$0xff]
    %v1298 = vld [vmem:[#allocation5 + $0xa8] sm:$0xff]
    %v1299 = vld [vmem:[#allocation5 + $0xb0] sm:$0xff]
    %v1300 = vld [vmem:[#allocation5 + $0xb8] sm:$0xff]
    %v1301 = vld [vmem:[#allocation5 + $0xc0] sm:$0xff]
    %v1302 = vld [vmem:[#allocation5 + $0xc8] sm:$0xff]
    %v1303 = vld [vmem:[#allocation5 + $0xd0] sm:$0xff]
    %v1304 = vld [vmem:[#allocation5 + $0xd8] sm:$0xff]
    %v1305 = vld [vmem:[#allocation5 + $0xe0] sm:$0xff]
    %v1306 = vld [vmem:[#allocation5 + $0xe8] sm:$0xff]
    %v1307 = vld [vmem:[#allocation5 + $0xf0] sm:$0xff]
    %v1308 = vld [vmem:[#allocation5 + $0xf8] sm:$0xff]
    %v1309 = vld [vmem:[#allocation5 + $0x100] sm:$0xff]
    %v1310 = vld [vmem:[#allocation5 + $0x108] sm:$0xff]
    %v1311 = vld [vmem:[#allocation5 + $0x110] sm:$0xff]
    %v1312 = vld [vmem:[#allocation5 + $0x118] sm:$0xff]
    %v1313 = vld [vmem:[#allocation5 + $0x120] sm:$0xff]
    %v1314 = vld [vmem:[#allocation5 + $0x128] sm:$0xff]
    %v1315 = vld [vmem:[#allocation5 + $0x130] sm:$0xff]
    %v1316 = vld [vmem:[#allocation5 + $0x138] sm:$0xff]
    %v1317 = vld [vmem:[#allocation5 + $0x140] sm:$0xff]
    %v1318 = vld [vmem:[#allocation5 + $0x148] sm:$0xff]
    %v1319 = vld [vmem:[#allocation5 + $0x150] sm:$0xff]
    %v1320 = vld [vmem:[#allocation5 + $0x158] sm:$0xff]
    %v1321 = vld [vmem:[#allocation5 + $0x160] sm:$0xff]
    %v1322 = vld [vmem:[#allocation5 + $0x168] sm:$0xff]
    %v1323 = vld [vmem:[#allocation5 + $0x170] sm:$0xff]
    %v1324 = vld [vmem:[#allocation5 + $0x178] sm:$0xff]
    %v1325 = vld [vmem:[%s6] sm:$0x7]
    %v1327 = vperm.slane %v1325, 0
    %v1328 = vperm.slane %v1325, 1
    %v1329 = vperm.slane %v1325, 2
    %1333 = vmatpush.msra.mxu0 %v1322
    %1334 = vmatpush.msra.mxu0 %v1319
    %1335 = vmatpush.msra.mxu0 %v1316
    %1336 = vmatpush.msra.mxu0 %v1313
    %1337 = vmatpush.msra.mxu0 %v1310
    %1338 = vmatpush.msra.mxu0 %v1307
    %1339 = vmatpush.msra.mxu0 %v1304
    %1340 = vmatpush.msra.mxu0 %v1301
    %1341 = vmatpush.msra.mxu0 %v1298
    %1342 = vmatpush.msra.mxu0 %v1295
    %1343 = vmatpush.msra.mxu0 %v1292
    %1344 = vmatpush.msra.mxu0 %v1289
    %1345 = vmatpush.msra.mxu0 %v1286
    %1346 = vmatpush.msra.mxu0 %v1283
    %1347 = vmatpush.msra.mxu0 %v1280
    %1348 = vmatpush.msra.mxu0 %v1277
    %1349 = vmatmul.f32.gmra.mxu0 %v1275
    %v1350 = vpop.f32.mrf.mxu0
    %v1351 = vadd.f32 %v1327, %v1350
    %1352 = vdwg.mxu0
    %1353 = vmatpush.msra.mxu0 %v1323
    %1354 = vmatpush.msra.mxu0 %v1320
    %1355 = vmatpush.msra.mxu0 %v1317
    %1356 = vmatpush.msra.mxu0 %v1314
    %1357 = vmatpush.msra.mxu0 %v1311
    %1358 = vmatpush.msra.mxu0 %v1308
    %1359 = vmatpush.msra.mxu0 %v1305
    %1360 = vmatpush.msra.mxu0 %v1302
    %1361 = vmatpush.msra.mxu0 %v1299
    %1362 = vmatpush.msra.mxu0 %v1296
    %1363 = vmatpush.msra.mxu0 %v1293
    %1364 = vmatpush.msra.mxu0 %v1290
    %1365 = vmatpush.msra.mxu0 %v1287
    %1366 = vmatpush.msra.mxu0 %v1284
    %1367 = vmatpush.msra.mxu0 %v1281
    %1368 = vmatpush.msra.mxu0 %v1278
    %1369 = vmatmul.f32.gmra.mxu0 %v1275
    %v1370 = vpop.f32.mrf.mxu0
    %v1371 = vadd.f32 %v1328, %v1370
    %1372 = vdwg.mxu0
    %1373 = vmatpush.msra.mxu0 %v1324
    %1374 = vmatpush.msra.mxu0 %v1321
    %1375 = vmatpush.msra.mxu0 %v1318
    %1376 = vmatpush.msra.mxu0 %v1315
    %1377 = vmatpush.msra.mxu0 %v1312
    %1378 = vmatpush.msra.mxu0 %v1309
    %1379 = vmatpush.msra.mxu0 %v1306
    %1380 = vmatpush.msra.mxu0 %v1303
    %1381 = vmatpush.msra.mxu0 %v1300
    %1382 = vmatpush.msra.mxu0 %v1297
    %1383 = vmatpush.msra.mxu0 %v1294
    %1384 = vmatpush.msra.mxu0 %v1291
    %1385 = vmatpush.msra.mxu0 %v1288
    %1386 = vmatpush.msra.mxu0 %v1285
    %1387 = vmatpush.msra.mxu0 %v1282
    %1388 = vmatpush.msra.mxu0 %v1279
    %1389 = vmatmul.f32.gmra.mxu0 %v1275
    %v1390 = vpop.f32.mrf.mxu0
    %v1391 = vadd.f32 %v1329, %v1390
    %1392 = vdwg.mxu0
    %s1393 = scalar_lea.vmem [#allocation4], 6
    %v1394 = vld [vmem:[%s1393] ss:$8 sm:$0x7]
    %v1395 = vadd.f32 %v1394, %v1351
    %v1396 = vxor.u32 %v1395, 2147483648
    %v1397 = vmul.f32 %v1396, 1.442695
    %v1398 = vpow.pop %v1397
    %v1399 = vadd.f32 %v1398, 1.0
    %v1400 = vrcp.pop %v1399
    %v1401 = vmul.f32 %v1399, %v1400
    %v1402 = vsub.f32 1.0, %v1401
    %v1403 = vmul.f32 %v1400, %v1402
    %v1404 = vadd.f32 %v1400, %v1403
    %vm1405 = vweird.f32 %v1399
    %vm1406 = vweird.f32 %v1400
    %vm1407 = vmor %vm1405, %vm1406
    %v1408 = vsel %vm1407, %v1400, %v1404
    %v1409 = vand.u32 2147483647, %v1399
    %vm1410 = vcmp.eq.f32.partialorder %v1409, 8.507059e+37
    %v1411 = vand.u32 %v1399, 2147483648
    %v1412 = vor.u32 1.1754944e-38, %v1411
    %v1413 = vsel %vm1410, %v1412, %v1408
    %v1414 = vmul.f32 1.0, %v1413
    %v1416 = vrot.slane %v1394, 1
    %v1418 = vadd.f32 %v1416, %v1371
    %v1419 = vxor.u32 %v1418, 2147483648
    %v1420 = vmul.f32 %v1419, 1.442695
    %v1421 = vpow.pop %v1420
    %v1422 = vadd.f32 %v1421, 1.0
    %v1423 = vrcp.pop %v1422
    %v1424 = vmul.f32 %v1422, %v1423
    %v1425 = vsub.f32 1.0, %v1424
    %v1426 = vmul.f32 %v1423, %v1425
    %v1427 = vadd.f32 %v1423, %v1426
    %vm1428 = vweird.f32 %v1422
    %vm1429 = vweird.f32 %v1423
    %vm1430 = vmor %vm1428, %vm1429
    %v1431 = vsel %vm1430, %v1423, %v1427
    %v1432 = vand.u32 2147483647, %v1422
    %vm1433 = vcmp.eq.f32.partialorder %v1432, 8.507059e+37
    %v1434 = vand.u32 %v1422, 2147483648
    %v1435 = vor.u32 1.1754944e-38, %v1434
    %v1436 = vsel %vm1433, %v1435, %v1431
    %v1437 = vmul.f32 1.0, %v1436
    %v1438 = vmul.f32 %v1414, %v1391
    %v1439 = vrot.slane %v1394, 2
    %v1441 = vadd.f32 %v1439, %v1438
    %v1442 = vtanh.pop %v1441
    %v1443 = vsub.f32 1.0, %v1437
    %v1444 = vmul.f32 %v1443, %v1442
    %v1445 = vmul.f32 %v1437, %v1275
    %v1446 = vadd.f32 %v1444, %v1445
    %1447 = vst [vmem:[#allocation13 + $0x6] sm:$0x1] %v1446
    %v1448 = vld [vmem:[#allocation5] sm:$0xff]
    %v1449 = vld [vmem:[#allocation5 + $0x8] sm:$0xff]
    %v1450 = vld [vmem:[#allocation5 + $0x10] sm:$0xff]
    %v1451 = vld [vmem:[#allocation5 + $0x18] sm:$0xff]
    %v1452 = vld [vmem:[#allocation5 + $0x20] sm:$0xff]
    %v1453 = vld [vmem:[#allocation5 + $0x28] sm:$0xff]
    %v1454 = vld [vmem:[#allocation5 + $0x30] sm:$0xff]
    %v1455 = vld [vmem:[#allocation5 + $0x38] sm:$0xff]
    %v1456 = vld [vmem:[#allocation5 + $0x40] sm:$0xff]
    %v1457 = vld [vmem:[#allocation5 + $0x48] sm:$0xff]
    %v1458 = vld [vmem:[#allocation5 + $0x50] sm:$0xff]
    %v1459 = vld [vmem:[#allocation5 + $0x58] sm:$0xff]
    %v1460 = vld [vmem:[#allocation5 + $0x60] sm:$0xff]
    %v1461 = vld [vmem:[#allocation5 + $0x68] sm:$0xff]
    %v1462 = vld [vmem:[#allocation5 + $0x70] sm:$0xff]
    %v1463 = vld [vmem:[#allocation5 + $0x78] sm:$0xff]
    %v1464 = vld [vmem:[#allocation5 + $0x80] sm:$0xff]
    %v1465 = vld [vmem:[#allocation5 + $0x88] sm:$0xff]
    %v1466 = vld [vmem:[#allocation5 + $0x90] sm:$0xff]
    %v1467 = vld [vmem:[#allocation5 + $0x98] sm:$0xff]
    %v1468 = vld [vmem:[#allocation5 + $0xa0] sm:$0xff]
    %v1469 = vld [vmem:[#allocation5 + $0xa8] sm:$0xff]
    %v1470 = vld [vmem:[#allocation5 + $0xb0] sm:$0xff]
    %v1471 = vld [vmem:[#allocation5 + $0xb8] sm:$0xff]
    %v1472 = vld [vmem:[#allocation5 + $0xc0] sm:$0xff]
    %v1473 = vld [vmem:[#allocation5 + $0xc8] sm:$0xff]
    %v1474 = vld [vmem:[#allocation5 + $0xd0] sm:$0xff]
    %v1475 = vld [vmem:[#allocation5 + $0xd8] sm:$0xff]
    %v1476 = vld [vmem:[#allocation5 + $0xe0] sm:$0xff]
    %v1477 = vld [vmem:[#allocation5 + $0xe8] sm:$0xff]
    %v1478 = vld [vmem:[#allocation5 + $0xf0] sm:$0xff]
    %v1479 = vld [vmem:[#allocation5 + $0xf8] sm:$0xff]
    %v1480 = vld [vmem:[#allocation5 + $0x100] sm:$0xff]
    %v1481 = vld [vmem:[#allocation5 + $0x108] sm:$0xff]
    %v1482 = vld [vmem:[#allocation5 + $0x110] sm:$0xff]
    %v1483 = vld [vmem:[#allocation5 + $0x118] sm:$0xff]
    %v1484 = vld [vmem:[#allocation5 + $0x120] sm:$0xff]
    %v1485 = vld [vmem:[#allocation5 + $0x128] sm:$0xff]
    %v1486 = vld [vmem:[#allocation5 + $0x130] sm:$0xff]
    %v1487 = vld [vmem:[#allocation5 + $0x138] sm:$0xff]
    %v1488 = vld [vmem:[#allocation5 + $0x140] sm:$0xff]
    %v1489 = vld [vmem:[#allocation5 + $0x148] sm:$0xff]
    %v1490 = vld [vmem:[#allocation5 + $0x150] sm:$0xff]
    %v1491 = vld [vmem:[#allocation5 + $0x158] sm:$0xff]
    %v1492 = vld [vmem:[#allocation5 + $0x160] sm:$0xff]
    %v1493 = vld [vmem:[#allocation5 + $0x168] sm:$0xff]
    %v1494 = vld [vmem:[#allocation5 + $0x170] sm:$0xff]
    %v1495 = vld [vmem:[#allocation5 + $0x178] sm:$0xff]
    %v1496 = vld [vmem:[%s6] sm:$0x7]
    %v1498 = vperm.slane %v1496, 0
    %v1499 = vperm.slane %v1496, 1
    %v1500 = vperm.slane %v1496, 2
    %1504 = vmatpush.msra.mxu0 %v1493
    %1505 = vmatpush.msra.mxu0 %v1490
    %1506 = vmatpush.msra.mxu0 %v1487
    %1507 = vmatpush.msra.mxu0 %v1484
    %1508 = vmatpush.msra.mxu0 %v1481
    %1509 = vmatpush.msra.mxu0 %v1478
    %1510 = vmatpush.msra.mxu0 %v1475
    %1511 = vmatpush.msra.mxu0 %v1472
    %1512 = vmatpush.msra.mxu0 %v1469
    %1513 = vmatpush.msra.mxu0 %v1466
    %1514 = vmatpush.msra.mxu0 %v1463
    %1515 = vmatpush.msra.mxu0 %v1460
    %1516 = vmatpush.msra.mxu0 %v1457
    %1517 = vmatpush.msra.mxu0 %v1454
    %1518 = vmatpush.msra.mxu0 %v1451
    %1519 = vmatpush.msra.mxu0 %v1448
    %1520 = vmatmul.f32.gmra.mxu0 %v1446
    %v1521 = vpop.f32.mrf.mxu0
    %v1522 = vadd.f32 %v1498, %v1521
    %1523 = vdwg.mxu0
    %1524 = vmatpush.msra.mxu0 %v1494
    %1525 = vmatpush.msra.mxu0 %v1491
    %1526 = vmatpush.msra.mxu0 %v1488
    %1527 = vmatpush.msra.mxu0 %v1485
    %1528 = vmatpush.msra.mxu0 %v1482
    %1529 = vmatpush.msra.mxu0 %v1479
    %1530 = vmatpush.msra.mxu0 %v1476
    %1531 = vmatpush.msra.mxu0 %v1473
    %1532 = vmatpush.msra.mxu0 %v1470
    %1533 = vmatpush.msra.mxu0 %v1467
    %1534 = vmatpush.msra.mxu0 %v1464
    %1535 = vmatpush.msra.mxu0 %v1461
    %1536 = vmatpush.msra.mxu0 %v1458
    %1537 = vmatpush.msra.mxu0 %v1455
    %1538 = vmatpush.msra.mxu0 %v1452
    %1539 = vmatpush.msra.mxu0 %v1449
    %1540 = vmatmul.f32.gmra.mxu0 %v1446
    %v1541 = vpop.f32.mrf.mxu0
    %v1542 = vadd.f32 %v1499, %v1541
    %1543 = vdwg.mxu0
    %1544 = vmatpush.msra.mxu0 %v1495
    %1545 = vmatpush.msra.mxu0 %v1492
    %1546 = vmatpush.msra.mxu0 %v1489
    %1547 = vmatpush.msra.mxu0 %v1486
    %1548 = vmatpush.msra.mxu0 %v1483
    %1549 = vmatpush.msra.mxu0 %v1480
    %1550 = vmatpush.msra.mxu0 %v1477
    %1551 = vmatpush.msra.mxu0 %v1474
    %1552 = vmatpush.msra.mxu0 %v1471
    %1553 = vmatpush.msra.mxu0 %v1468
    %1554 = vmatpush.msra.mxu0 %v1465
    %1555 = vmatpush.msra.mxu0 %v1462
    %1556 = vmatpush.msra.mxu0 %v1459
    %1557 = vmatpush.msra.mxu0 %v1456
    %1558 = vmatpush.msra.mxu0 %v1453
    %1559 = vmatpush.msra.mxu0 %v1450
    %1560 = vmatmul.f32.gmra.mxu0 %v1446
    %v1561 = vpop.f32.mrf.mxu0
    %v1562 = vadd.f32 %v1500, %v1561
    %1563 = vdwg.mxu0
    %s1564 = scalar_lea.vmem [#allocation4], 7
    %v1565 = vld [vmem:[%s1564] ss:$8 sm:$0x7]
    %v1566 = vadd.f32 %v1565, %v1522
    %v1567 = vxor.u32 %v1566, 2147483648
    %v1568 = vmul.f32 %v1567, 1.442695
    %v1569 = vpow.pop %v1568
    %v1570 = vadd.f32 %v1569, 1.0
    %v1571 = vrcp.pop %v1570
    %v1572 = vmul.f32 %v1570, %v1571
    %v1573 = vsub.f32 1.0, %v1572
    %v1574 = vmul.f32 %v1571, %v1573
    %v1575 = vadd.f32 %v1571, %v1574
    %vm1576 = vweird.f32 %v1570
    %vm1577 = vweird.f32 %v1571
    %vm1578 = vmor %vm1576, %vm1577
    %v1579 = vsel %vm1578, %v1571, %v1575
    %v1580 = vand.u32 2147483647, %v1570
    %vm1581 = vcmp.eq.f32.partialorder %v1580, 8.507059e+37
    %v1582 = vand.u32 %v1570, 2147483648
    %v1583 = vor.u32 1.1754944e-38, %v1582
    %v1584 = vsel %vm1581, %v1583, %v1579
    %v1585 = vmul.f32 1.0, %v1584
    %v1587 = vrot.slane %v1565, 1
    %v1589 = vadd.f32 %v1587, %v1542
    %v1590 = vxor.u32 %v1589, 2147483648
    %v1591 = vmul.f32 %v1590, 1.442695
    %v1592 = vpow.pop %v1591
    %v1593 = vadd.f32 %v1592, 1.0
    %v1594 = vrcp.pop %v1593
    %v1595 = vmul.f32 %v1593, %v1594
    %v1596 = vsub.f32 1.0, %v1595
    %v1597 = vmul.f32 %v1594, %v1596
    %v1598 = vadd.f32 %v1594, %v1597
    %vm1599 = vweird.f32 %v1593
    %vm1600 = vweird.f32 %v1594
    %vm1601 = vmor %vm1599, %vm1600
    %v1602 = vsel %vm1601, %v1594, %v1598
    %v1603 = vand.u32 2147483647, %v1593
    %vm1604 = vcmp.eq.f32.partialorder %v1603, 8.507059e+37
    %v1605 = vand.u32 %v1593, 2147483648
    %v1606 = vor.u32 1.1754944e-38, %v1605
    %v1607 = vsel %vm1604, %v1606, %v1602
    %v1608 = vmul.f32 1.0, %v1607
    %v1609 = vmul.f32 %v1585, %v1562
    %v1610 = vrot.slane %v1565, 2
    %v1612 = vadd.f32 %v1610, %v1609
    %v1613 = vtanh.pop %v1612
    %v1614 = vsub.f32 1.0, %v1608
    %v1615 = vmul.f32 %v1614, %v1613
    %v1616 = vmul.f32 %v1608, %v1446
    %v1617 = vadd.f32 %v1615, %v1616
    %1618 = vst [vmem:[#allocation13 + $0x7] sm:$0x1] %v1617
    %1619 = vst [vmem:[#allocation14] sm:$0x1] %v1617
    // Predicated region
    $region42: #{tpu_custom_call.1} parent=1 // pred_check
      _
    $region43: #{tpu_custom_call.1} parent=1 // pred_check_branch
      %1621 = sbr.rel (0) target = $region45
    $region44: #{tpu_custom_call.1} parent=1 // pred_region
      %1623 = vsyncadd [#allocation10], 0
      %s1625 = sshll.u32 [#allocation13], 4
      %s1626 = int_to_ptr.vmem [resolvable:$true] %s1625
      %s1627 = sshll.u32 %s8, 4
      %s1628 = int_to_ptr.hbm [resolvable:$true] %s1627
      %1630 = dma.vmem_to_hbm [thread:$0]  %s1626, 128, %s1628, [#allocation10]
    $region45: #{tpu_custom_call.1} parent=1 // pred_fallthru
      _
    // Predicated region
    $region46: #{tpu_custom_call.1} parent=1 // pred_check
      _
    $region47: #{tpu_custom_call.1} parent=1 // pred_check_branch
      %1632 = sbr.rel (0) target = $region49
    $region48: #{tpu_custom_call.1} parent=1 // pred_region
      %1634 = vsyncadd [#allocation15], 0
      %s1636 = sshll.u32 [#allocation14], 4
      %s1637 = int_to_ptr.vmem [resolvable:$true] %s1636
      %s1638 = sshll.u32 %s9, 4
      %s1639 = int_to_ptr.hbm [resolvable:$true] %s1638
      %1641 = dma.vmem_to_hbm [thread:$0]  %s1637, 16, %s1639, [#allocation15]
    $region49: #{tpu_custom_call.1} parent=1 // pred_fallthru
      _
    // Predicated region
    $region50: #{tpu_custom_call.1} parent=1 // pred_check
      _
    $region51: #{tpu_custom_call.1} parent=1 // pred_check_branch
      %1643 = sbr.rel (0) target = $region53
    $region52: #{tpu_custom_call.1} parent=1 // pred_region
      %1645 = dma.done [#allocation10], 128
    $region53: #{tpu_custom_call.1} parent=1 // pred_fallthru
      _
    // Predicated region
    $region54: #{tpu_custom_call.1} parent=1 // pred_check
      _
    $region55: #{tpu_custom_call.1} parent=1 // pred_check_branch
      %1647 = sbr.rel (0) target = $region57
    $region56: #{tpu_custom_call.1} parent=1 // pred_region
      %1649 = dma.done [#allocation15], 16
    $region57: #{tpu_custom_call.1} parent=1 // pred_fallthru
      _
    %1650 = vsyncpa [#allocation9], 1
    %1651 = vsyncpa [#allocation10], 1
    %1652 = vsyncpa [#allocation15], 1
    %1653 = vsyncpa [#allocation11], 1
  %1654 = vsyncmov [#allocation6]
  %s1655 = vpop.sfrf %1654
  %p1656 = scmp.eq.s32.totalorder %s1655, 0
  %p1657 = pneg %p1656
  %1659 = shalt.err (%p1657)
  %1660 = vsyncmov [#allocation7]
  %s1661 = vpop.sfrf %1660
  %p1662 = scmp.eq.s32.totalorder %s1661, 0
  %p1663 = pneg %p1662
  %1665 = shalt.err (%p1663)

</llo_original>
